<compile_context>
chip_gen: v5e
topology: v5e:2x2
jax: 0.10.0
libtpu: 0.0.40
codegen_flags: <defaults>
</compile_context>

<pallas_src>
import functools

import jax
import jax.numpy as jnp
import numpy as np
from jax.experimental import pallas as pl
from jax.experimental.pallas import tpu as pltpu


def _round_up(x, m):
    return ((x + m - 1) // m) * m


def _centroid_kernel(feat_ref, prob_ref, dom_ref, est_ref, out_ref, den_acc, *,
                     alpha, eps, num_domains, k_pad, batch, b_tile, ragged_b):
    """One (feature-tile, batch-tile) grid step.

    feat_ref: (b_tile, f_tile)           compute-dtype features tile
    prob_ref: (b_tile, k_pad)            compute-dtype cluster probabilities
    dom_ref:  (b_tile, 1) int32          per-sample domain id
    est_ref / out_ref: (f_tile, (D+1)*k_pad) f32 state slab tile (HBM-aliased)
    den_acc:  (1, (D+1)*k_pad) f32       denominator accumulator
    """
    bi = pl.program_id(1)
    nb = pl.num_programs(1)

    @pl.when(bi == 0)
    def _init():
        out_ref[...] = jnp.zeros_like(out_ref)       # numerator accumulator
        den_acc[...] = jnp.zeros_like(den_acc)

    feat = feat_ref[...]                             # (b_tile, f_tile)
    prob = prob_ref[...]                             # (b_tile, k_pad)
    dom = dom_ref[...]                               # (b_tile, 1) int32
    zero = jnp.zeros((), prob.dtype)

    if ragged_b:
        # Ragged last batch tile: rows >= batch hold garbage/NaN fill.  Use
        # jnp.where (not mask-multiply) so NaNs cannot propagate.
        row = bi * b_tile + jax.lax.broadcasted_iota(jnp.int32, (b_tile, 1), 0)
        valid = row < batch                          # (b_tile, 1) bool
        feat = jnp.where(valid, feat, jnp.zeros((), feat.dtype))
    else:
        valid = None

    # Masked-prob slab built in-kernel (never touches HBM):
    #   pm[b, s*k_pad + k] = mask_s[b] * prob[b, k]
    # slot 0 = global (mask 1), slot s>=1 = domain s-1.  Slot boundaries are
    # 128-lane aligned (k_pad % 128 == 0) so the lane concat is pure layout.
    slabs = []
    for s in range(num_domains + 1):
        if s == 0:
            m = valid
        else:
            m = dom == (s - 1)
            if valid is not None:
                m = jnp.logical_and(m, valid)
        slabs.append(prob if m is None else jnp.where(m, prob, zero))
    pm = jnp.concatenate(slabs, axis=-1)             # (b_tile, (D+1)*k_pad)

    # ONE fused MXU matmul for every slot:
    #   num[f, n] += sum_b feat[b, f] * pm[b, n]   (f32 accumulation).
    out_ref[...] += jax.lax.dot_general(
        feat, pm,
        dimension_numbers=(((0,), (0,)), ((), ())),
        preferred_element_type=jnp.float32)
    # den[n] += sum_b pm[b, n]  (f32 accumulation, per perf review).
    den_acc[...] += jnp.sum(pm.astype(jnp.float32), axis=0, keepdims=True)

    @pl.when(bi == nb - 1)
    def _finalize():
        inv = 1.0 / (den_acc[...] + eps)             # exact f32, runs once
        centroid = out_ref[...] * inv                # (f_tile, NKp)
        # FixedMatrixEstimator EMA: new = old * alpha + centroid * (1 - alpha)
        out_ref[...] = est_ref[...] * alpha + centroid * (1.0 - alpha)


def _padded_clusters(num_clusters):
    return _round_up(num_clusters, 128)


def init_centroid_state(features_size, num_clusters, domains_count,
                        dtype=jnp.float32):
    """Zero-initialised estimator state slab, matching the PyTorch module.

    Layout: lane-concatenated [global | dom 0 | ... | dom D-1], each slot
    padded to a multiple of 128 lanes -> shape (F, (D+1)*Kpad).  The padding
    lanes stay zero forever (their centroid is 0 / (0 + eps) = 0)."""
    k_pad = _padded_clusters(num_clusters)
    return jnp.zeros((features_size, (domains_count + 1) * k_pad), dtype)


def centroid_estimator_forward(features, domains, cluster_probabilities,
                               est_state, *, alpha, domains_count, eps=0.001,
                               compute_dtype=jnp.bfloat16,
                               batch_tile=1024, feature_tile=256):
    """Functional CentroidEstimator.forward.

    features: (B, F), domains: (1, B) int, cluster_probabilities: (B, K),
    est_state: (F, (D+1)*Kpad) f32 slab from init_centroid_state.

    Returns (estimated_global_centroids (F, K),
             [per-domain estimated centroids (F, K)] * D,
             new_state (F, (D+1)*Kpad)).
    new_state aliases est_state's buffer (donate est_state under jit for a
    true in-place EMA update)."""
    B, F = features.shape
    K = cluster_probabilities.shape[1]
    D = int(domains_count)
    Kp = _padded_clusters(K)
    NKp = (D + 1) * Kp

    if est_state.shape != (F, NKp):
        raise ValueError("est_state must come from init_centroid_state")
    if est_state.dtype != jnp.float32:
        # NOTE: casting breaks the in-place aliasing; keep the state in f32.
        est_state = est_state.astype(jnp.float32)

    op_bytes = jnp.dtype(compute_dtype).itemsize
    feat = features.astype(compute_dtype)
    prob = cluster_probabilities.astype(compute_dtype)
    if Kp != K:
        prob = jnp.pad(prob, ((0, 0), (0, Kp - K)))   # tiny (B, K) pad only
    dom = domains.reshape(B, 1).astype(jnp.int32)

    # Batch: trailing reduction axis ("arbitrary"); ragged last tile is masked
    # inside the kernel (no jnp.pad of the big feature array).
    b_tile = B if B <= batch_tile else _round_up(batch_tile, 8)
    num_b = pl.cdiv(B, b_tile)
    ragged_b = (B % b_tile) != 0

    # Features: optional leading "parallel" axis (megacore on v7x, bounded
    # resident VMEM for large F).  Tiles must be 128-multiples; small F uses a
    # single full-extent block.
    f_tile_max = max(128, (int(feature_tile) // 128) * 128)
    f_tile = F if F <= f_tile_max else f_tile_max
    num_f = pl.cdiv(F, f_tile)

    kernel = functools.partial(
        _centroid_kernel, alpha=float(alpha), eps=float(eps), num_domains=D,
        k_pad=Kp, batch=B, b_tile=b_tile, ragged_b=ragged_b)

    flops = 2 * B * F * NKp
    bytes_accessed = (B * F + B * Kp) * op_bytes + B * 4 + 2 * F * NKp * 4
    vmem_est = (2 * b_tile * (f_tile + Kp) * op_bytes + 2 * b_tile * 4
                + 4 * f_tile * NKp * 4 + NKp * 4)
    vmem_limit = min(64 << 20, max(32 << 20, (vmem_est * 3) // 2))

    new_state = pl.pallas_call(
        kernel,
        out_shape=jax.ShapeDtypeStruct((F, NKp), jnp.float32),
        grid=(num_f, num_b),
        in_specs=[
            pl.BlockSpec((b_tile, f_tile), lambda fi, bi: (bi, fi)),  # features
            pl.BlockSpec((b_tile, Kp), lambda fi, bi: (bi, 0)),       # probs
            pl.BlockSpec((b_tile, 1), lambda fi, bi: (bi, 0)),        # domains
            pl.BlockSpec((f_tile, NKp), lambda fi, bi: (fi, 0)),      # state in
        ],
        out_specs=pl.BlockSpec((f_tile, NKp), lambda fi, bi: (fi, 0)),
        scratch_shapes=[pltpu.VMEM((1, NKp), jnp.float32)],           # den acc
        input_output_aliases={3: 0},                   # in-place EMA state
        compiler_params=pltpu.CompilerParams(
            dimension_semantics=("parallel", "arbitrary"),
            vmem_limit_bytes=int(vmem_limit)),
        cost_estimate=pl.CostEstimate(flops=int(flops), transcendentals=0,
                                      bytes_accessed=int(bytes_accessed)),
    )(feat, prob, dom, est_state)

    estimated_global = new_state[:, :K]
    estimated_domains = [new_state[:, (d + 1) * Kp:(d + 1) * Kp + K]
                         for d in range(D)]
    return estimated_global, estimated_domains, new_state


def _reference_forward(features, domains, probs, est_global, est_domains,
                       alpha, domains_count, eps=0.001):
    """Pure-JAX reference mirroring the PyTorch module (f32)."""
    unsq_feat = features[:, :, None]                 # (B, F, 1)
    unsq_prob = probs[:, None, :]                    # (B, 1, K)
    unsummed_num = unsq_feat * unsq_prob             # (B, F, K)

    def compute(num, cp):
        return jnp.sum(num, axis=0) / (jnp.sum(cp, axis=0) + eps)

    glob = compute(unsummed_num, unsq_prob)
    est_g = est_global * alpha + glob * (1.0 - alpha)
    est_d = []
    dom = domains.reshape(-1)
    for d in range(domains_count):
        m = (dom == d).astype(features.dtype)[:, None, None]
        cen_d = compute(unsummed_num * m, unsq_prob * m)
        est_d.append(est_domains[d] * alpha + cen_d * (1.0 - alpha))
    return est_g, est_d


if __name__ == "__main__":
    # batch, features_size, num_clusters, domains_count
    B, F, K, D = 75, 256, 16, 3
    alpha = 0.9

    key = jax.random.PRNGKey(0)
    k1, k2, k3 = jax.random.split(key, 3)
    features = jax.random.normal(k1, (B, F), dtype=jnp.float32)
    probs = jax.nn.softmax(jax.random.normal(k2, (B, K), dtype=jnp.float32), -1)
    domains = jax.random.randint(k3, (1, B), 0, D, dtype=jnp.int32)

    # Zero-initialised state, matching the module's __init__.
    est_state = init_centroid_state(F, K, D)

    # Reference: one step from the module's zero-initialised estimators.
    g_ref, d_ref = _reference_forward(
        features, domains, probs,
        jnp.zeros((F, K), jnp.float32), jnp.zeros((D, F, K), jnp.float32),
        alpha, D)

    # 1) Default bf16 streamed operands; small tiles to exercise the multi-tile
    #    ragged batch reduction and the F-tiled "parallel" axis.
    fwd_bf16 = jax.jit(functools.partial(
        centroid_estimator_forward, alpha=alpha, domains_count=D,
        compute_dtype=jnp.bfloat16, batch_tile=32, feature_tile=128))
    g, d_list, new_state = fwd_bf16(features, domains, probs, est_state)
    jax.block_until_ready(new_state)
    np.testing.assert_allclose(np.asarray(g), np.asarray(g_ref),
                               rtol=3e-2, atol=2e-3)
    for d in range(D):
        np.testing.assert_allclose(np.asarray(d_list[d]), np.asarray(d_ref[d]),
                                   rtol=3e-2, atol=2e-3)

    # 2) f32 operands, single batch tile: near-exact parity with the module.
    fwd_f32 = jax.jit(functools.partial(
        centroid_estimator_forward, alpha=alpha, domains_count=D,
        compute_dtype=jnp.float32))
    g32, d32, st32 = fwd_f32(features, domains, probs, est_state)
    jax.block_until_ready(st32)
    np.testing.assert_allclose(np.asarray(g32), np.asarray(g_ref),
                               rtol=2e-3, atol=1e-5)
    for d in range(D):
        np.testing.assert_allclose(np.asarray(d32[d]), np.asarray(d_ref[d]),
                                   rtol=2e-3, atol=1e-5)

    print("KERNEL_OK")
</pallas_src>

<mosaic_0001>
module attributes {stable_mosaic.version = 11 : i64} {
  func.func @_centroid_kernel(%arg0: i32, %arg1: i32, %arg2: memref<32x128xbf16, #tpu.memory_space<vmem>>, %arg3: memref<32x128xbf16, #tpu.memory_space<vmem>>, %arg4: memref<32x1xi32, #tpu.memory_space<vmem>>, %arg5: memref<128x512xf32, #tpu.memory_space<vmem>>, %arg6: memref<128x512xf32, #tpu.memory_space<vmem>>, %arg7: memref<1x512xf32, #tpu.memory_space<vmem>>) attributes {dimension_semantics = [#tpu.dimension_semantics<parallel>, #tpu.dimension_semantics<arbitrary>], iteration_bounds = array<i64: 2, 3>, scalar_prefetch = 0 : i64, scratch_operands = 1 : i64, tpu.core_type = #tpu.core_type<tc>, window_params = [{transform_indices = @transform_0, window_bounds = array<i64: 32, 128>}, {transform_indices = @transform_1, window_bounds = array<i64: 32, 128>}, {transform_indices = @transform_2, window_bounds = array<i64: 32, 1>}, {transform_indices = @transform_3, window_bounds = array<i64: 128, 512>}, {transform_indices = @transform_4, window_bounds = array<i64: 128, 512>}]} {
    %c0_i32 = arith.constant 0 : i32
    %0 = arith.cmpi eq, %arg1, %c0_i32 : i32
    %1 = arith.extui %0 : i1 to i32
    %c0_i32_0 = arith.constant 0 : i32
    %2 = arith.cmpi ne, %1, %c0_i32_0 : i32
    scf.if %2 {
      %cst_23 = arith.constant 0.000000e+00 : f32
      %55 = vector.broadcast %cst_23 : f32 to vector<128x512xf32>
      %c0_24 = arith.constant 0 : index
      %c0_25 = arith.constant 0 : index
      %56 = vector.load %arg6[%c0_24, %c0_25] : memref<128x512xf32, #tpu.memory_space<vmem>>, vector<128x512xf32>
      tpu.vector_store %arg6[%c0_24, %c0_25], %55 {strides = array<i32>} : memref<128x512xf32, #tpu.memory_space<vmem>>, vector<128x512xf32>,
      %cst_26 = arith.constant 0.000000e+00 : f32
      %57 = vector.broadcast %cst_26 : f32 to vector<1x512xf32>
      %c0_27 = arith.constant 0 : index
      %c0_28 = arith.constant 0 : index
      %58 = vector.load %arg7[%c0_27, %c0_28] : memref<1x512xf32, #tpu.memory_space<vmem>>, vector<1x512xf32>
      tpu.vector_store %arg7[%c0_27, %c0_28], %57 {strides = array<i32>} : memref<1x512xf32, #tpu.memory_space<vmem>>, vector<1x512xf32>,
    } else {
    }
    %c0 = arith.constant 0 : index
    %c0_1 = arith.constant 0 : index
    %3 = vector.load %arg2[%c0, %c0_1] : memref<32x128xbf16, #tpu.memory_space<vmem>>, vector<32x128xbf16>
    %c0_2 = arith.constant 0 : index
    %c0_3 = arith.constant 0 : index
    %4 = vector.load %arg3[%c0_2, %c0_3] : memref<32x128xbf16, #tpu.memory_space<vmem>>, vector<32x128xbf16>
    %c0_4 = arith.constant 0 : index
    %c0_5 = arith.constant 0 : index
    %5 = vector.load %arg4[%c0_4, %c0_5] : memref<32x1xi32, #tpu.memory_space<vmem>>, vector<32x1xi32>
    %c32_i32 = arith.constant 32 : i32
    %6 = arith.muli %arg1, %c32_i32 : i32
    %7 = tpu.iota {dimensions = array<i32: 0>} : vector<32x1xi32>
    %8 = vector.broadcast %6 : i32 to vector<32x1xi32>
    %9 = arith.addi %8, %7 : vector<32x1xi32>
    %c75_i32 = arith.constant 75 : i32
    %10 = vector.broadcast %c75_i32 : i32 to vector<32x1xi32>
    %11 = arith.cmpi slt, %9, %10 : vector<32x1xi32>
    %cst = arith.constant 0.000000e+00 : bf16
    %12 = vector.shape_cast %11 : vector<32x1xi1> to vector<32x1xi1>
    %13 = vector.broadcast %12 : vector<32x1xi1> to vector<32x128xi1>
    %14 = vector.broadcast %cst : bf16 to vector<32x128xbf16>
    %15 = arith.select %13, %3, %14 : vector<32x128xi1>, vector<32x128xbf16>
    %cst_6 = arith.constant 0.000000e+00 : bf16
    %16 = vector.shape_cast %11 : vector<32x1xi1> to vector<32x1xi1>
    %17 = vector.broadcast %16 : vector<32x1xi1> to vector<32x128xi1>
    %18 = vector.broadcast %cst_6 : bf16 to vector<32x128xbf16>
    %19 = arith.select %17, %4, %18 : vector<32x128xi1>, vector<32x128xbf16>
    %c0_i32_7 = arith.constant 0 : i32
    %20 = vector.broadcast %c0_i32_7 : i32 to vector<32x1xi32>
    %21 = arith.cmpi eq, %5, %20 : vector<32x1xi32>
    %22 = arith.andi %21, %11 : vector<32x1xi1>
    %cst_8 = arith.constant 0.000000e+00 : bf16
    %23 = vector.shape_cast %22 : vector<32x1xi1> to vector<32x1xi1>
    %24 = vector.broadcast %23 : vector<32x1xi1> to vector<32x128xi1>
    %25 = vector.broadcast %cst_8 : bf16 to vector<32x128xbf16>
    %26 = arith.select %24, %4, %25 : vector<32x128xi1>, vector<32x128xbf16>
    %c1_i32 = arith.constant 1 : i32
    %27 = vector.broadcast %c1_i32 : i32 to vector<32x1xi32>
    %28 = arith.cmpi eq, %5, %27 : vector<32x1xi32>
    %29 = arith.andi %28, %11 : vector<32x1xi1>
    %cst_9 = arith.constant 0.000000e+00 : bf16
    %30 = vector.shape_cast %29 : vector<32x1xi1> to vector<32x1xi1>
    %31 = vector.broadcast %30 : vector<32x1xi1> to vector<32x128xi1>
    %32 = vector.broadcast %cst_9 : bf16 to vector<32x128xbf16>
    %33 = arith.select %31, %4, %32 : vector<32x128xi1>, vector<32x128xbf16>
    %c2_i32 = arith.constant 2 : i32
    %34 = vector.broadcast %c2_i32 : i32 to vector<32x1xi32>
    %35 = arith.cmpi eq, %5, %34 : vector<32x1xi32>
    %36 = arith.andi %35, %11 : vector<32x1xi1>
    %cst_10 = arith.constant 0.000000e+00 : bf16
    %37 = vector.shape_cast %36 : vector<32x1xi1> to vector<32x1xi1>
    %38 = vector.broadcast %37 : vector<32x1xi1> to vector<32x128xi1>
    %39 = vector.broadcast %cst_10 : bf16 to vector<32x128xbf16>
    %40 = arith.select %38, %4, %39 : vector<32x128xi1>, vector<32x128xbf16>
    %41 = tpu.concatenate %19, %26, %33, %40 in 1 : vector<32x128xbf16>, vector<32x128xbf16>, vector<32x128xbf16>, vector<32x128xbf16> -> vector<32x512xbf16>
    %c0_11 = arith.constant 0 : index
    %c0_12 = arith.constant 0 : index
    %42 = vector.load %arg6[%c0_11, %c0_12] : memref<128x512xf32, #tpu.memory_space<vmem>>, vector<128x512xf32>
    %cst_13 = arith.constant dense<0.000000e+00> : vector<128x512xf32>
    %43 = tpu.matmul %15, %41, %cst_13 {dimension_numbers = #tpu.dot_dimension_numbers<[0], [0], [1], [1], [0, 1, 1, 1], [], []>} : vector<32x128xbf16>, vector<32x512xbf16>, vector<128x512xf32> -> vector<128x512xf32>
    %44 = arith.addf %42, %43 : vector<128x512xf32>
    %c0_14 = arith.constant 0 : index
    %c0_15 = arith.constant 0 : index
    %45 = vector.load %arg6[%c0_14, %c0_15] : memref<128x512xf32, #tpu.memory_space<vmem>>, vector<128x512xf32>
    tpu.vector_store %arg6[%c0_14, %c0_15], %44 {strides = array<i32>} : memref<128x512xf32, #tpu.memory_space<vmem>>, vector<128x512xf32>,
    %c0_16 = arith.constant 0 : index
    %c0_17 = arith.constant 0 : index
    %46 = vector.load %arg7[%c0_16, %c0_17] : memref<1x512xf32, #tpu.memory_space<vmem>>, vector<1x512xf32>
    %47 = arith.extf %41 : vector<32x512xbf16> to vector<32x512xf32>
    %cst_18 = arith.constant dense<0.000000e+00> : vector<512xf32>
    %48 = vector.multi_reduction <add>, %47, %cst_18 [0] : vector<32x512xf32> to vector<512xf32>
    %49 = vector.shape_cast %48 : vector<512xf32> to vector<1x512xf32>
    %50 = arith.addf %46, %49 : vector<1x512xf32>
    %c0_19 = arith.constant 0 : index
    %c0_20 = arith.constant 0 : index
    %51 = vector.load %arg7[%c0_19, %c0_20] : memref<1x512xf32, #tpu.memory_space<vmem>>, vector<1x512xf32>
    tpu.vector_store %arg7[%c0_19, %c0_20], %50 {strides = array<i32>} : memref<1x512xf32, #tpu.memory_space<vmem>>, vector<1x512xf32>,
    %c2_i32_21 = arith.constant 2 : i32
    %52 = arith.cmpi eq, %arg1, %c2_i32_21 : i32
    %53 = arith.extui %52 : i1 to i32
    %c0_i32_22 = arith.constant 0 : i32
    %54 = arith.cmpi ne, %53, %c0_i32_22 : i32
    scf.if %54 {
      %c0_23 = arith.constant 0 : index
      %c0_24 = arith.constant 0 : index
      %55 = vector.load %arg7[%c0_23, %c0_24] : memref<1x512xf32, #tpu.memory_space<vmem>>, vector<1x512xf32>
      %cst_25 = arith.constant 1.000000e-03 : f32
      %56 = vector.broadcast %cst_25 : f32 to vector<1x512xf32>
      %57 = arith.addf %55, %56 : vector<1x512xf32>
      %cst_26 = arith.constant 1.000000e+00 : f32
      %58 = vector.broadcast %cst_26 : f32 to vector<1x512xf32>
      %59 = arith.divf %58, %57 : vector<1x512xf32>
      %c0_27 = arith.constant 0 : index
      %c0_28 = arith.constant 0 : index
      %60 = vector.load %arg6[%c0_27, %c0_28] : memref<128x512xf32, #tpu.memory_space<vmem>>, vector<128x512xf32>
      %61 = vector.broadcast %59 : vector<1x512xf32> to vector<128x512xf32>
      %62 = arith.mulf %60, %61 : vector<128x512xf32>
      %c0_29 = arith.constant 0 : index
      %c0_30 = arith.constant 0 : index
      %63 = vector.load %arg5[%c0_29, %c0_30] : memref<128x512xf32, #tpu.memory_space<vmem>>, vector<128x512xf32>
      %cst_31 = arith.constant 0.899999976 : f32
      %64 = vector.broadcast %cst_31 : f32 to vector<128x512xf32>
      %65 = arith.mulf %63, %64 : vector<128x512xf32>
      %cst_32 = arith.constant 1.000000e-01 : f32
      %66 = vector.broadcast %cst_32 : f32 to vector<128x512xf32>
      %67 = arith.mulf %62, %66 : vector<128x512xf32>
      %68 = arith.addf %65, %67 : vector<128x512xf32>
      %c0_33 = arith.constant 0 : index
      %c0_34 = arith.constant 0 : index
      %69 = vector.load %arg6[%c0_33, %c0_34] : memref<128x512xf32, #tpu.memory_space<vmem>>, vector<128x512xf32>
      tpu.vector_store %arg6[%c0_33, %c0_34], %68 {strides = array<i32>} : memref<128x512xf32, #tpu.memory_space<vmem>>, vector<128x512xf32>,
    } else {
    }
    return
  }
  func.func @transform_0(%arg0: i32, %arg1: i32) -> (i32, i32) {
    %c0_i32 = arith.constant 0 : i32
    return %arg1, %arg0 : i32, i32
  }
  func.func @transform_1(%arg0: i32, %arg1: i32) -> (i32, i32) {
    %c0_i32 = arith.constant 0 : i32
    %c0_i32_0 = arith.constant 0 : i32
    return %arg1, %c0_i32 : i32, i32
  }
  func.func @transform_2(%arg0: i32, %arg1: i32) -> (i32, i32) {
    %c0_i32 = arith.constant 0 : i32
    %c0_i32_0 = arith.constant 0 : i32
    return %arg1, %c0_i32 : i32, i32
  }
  func.func @transform_3(%arg0: i32, %arg1: i32) -> (i32, i32) {
    %c0_i32 = arith.constant 0 : i32
    %c0_i32_0 = arith.constant 0 : i32
    return %arg0, %c0_i32 : i32, i32
  }
  func.func @transform_4(%arg0: i32, %arg1: i32) -> (i32, i32) {
    %c0_i32 = arith.constant 0 : i32
    %c0_i32_0 = arith.constant 0 : i32
    return %arg0, %c0_i32 : i32, i32
  }
}

</mosaic_0001>

<llo_original>
// kernel: centroid_estimator_forward.1
$region0: #{centroid_estimator_forward.1}
  #allocation0 [shape = 'u32[]', space=smem, size = 0x4, offset = 0x4, fixed_abs, tag = 'smem constant byte address 0x4 - core index']
  #allocation1 [shape = 'u32[72,128]{1,0:T(1,128)}', space=vmem, size = 0x9000, scoped, tag = 'internal scratch']
  #allocation2 [shape = 'f32[1,512]{1,0:T(1,128)}', space=vmem, size = 0x800, scoped, tag = 'scratch operand']
  %s0 = inlined_call_operand.vmem [shape: bf16[75,256], index: 0, kind: input, shape index: {}]
  %s1 = inlined_call_operand.vmem [shape: bf16[75,128], index: 1, kind: input, shape index: {}]
  %s2 = inlined_call_operand.vmem [shape: s32[75,1], index: 2, kind: input, shape index: {}]
  %s3 = inlined_call_operand.vmem [shape: f32[256,512], index: 3, kind: input, shape index: {}, may-alias: {3,4}]
  %s4 = inlined_call_operand.vmem [shape: f32[256,512], index: 4, kind: output, shape index: {}, may-alias: {3,4}]
  %s5 = sld [smem:[#allocation0]]
  $region105: #{centroid_estimator_forward.1} parent=0
    _
  %s7 = ssub.s32 1, %s5
  %s8 = scalar_select 0, %s7, %s5
  $region1: #{centroid_estimator_forward.1} parent=0
    #allocation3 [shape = 'u8[16384]{0}', space=vmem, size = 0x4000, scoped, tag = 'input window, operand 0']
    loop: start=0, step=1, limit=8
    $region2: #{centroid_estimator_forward.1} parent=1 // loop_pre_header
      _
    $region3: #{centroid_estimator_forward.1} parent=1 // loop_header
      %s10 = sphi 0, %s14
      %p11 = scmp.ge.s32.totalorder %s10, 8
      %s17 = sphi 0, %s29
      %s18 = sphi 0, %s25
      %s19 = sphi 0, %s17
      %s20 = sphi 0, %s18
      %s21 = sphi 0, %s19
      %s22 = sphi 0, %s20
      %s34 = sphi 0, %s36
      %s37 = sphi 0, %s34
      %s38 = sphi 0, %s37
      %s54 = sphi 0, %s38
      %s60 = sphi 0, %s62
      %s63 = sphi 0, %s60
      %s64 = sphi 0, %s63
      %s80 = sphi 0, %s64
      %s86 = sphi 0, %s88
      %s89 = sphi 0, %s86
      %s90 = sphi 0, %s89
      %s106 = sphi 0, %s90
      %s112 = sphi 0, %s114
      %s115 = sphi 0, %s112
      %s116 = sphi 0, %s115
      %s132 = sphi 0, %s116
      %s138 = sphi 0, %s140
      %s141 = sphi 0, %s138
      %s142 = sphi 0, %s141
      %s158 = sphi 0, %s142
    $region4: #{centroid_estimator_forward.1} parent=1 // loop_header_branch
      %13 = sbr.rel (%p11) target = $region8
    $region5: #{centroid_estimator_forward.1} parent=1 // loop_body
      %s15 = ssub.s32 %s10, 1
      %s16 = ssub.s32 %s10, 2
      %s23 = sadd.s32 1, %s18
      %p24 = scmp.ge.s32.totalorder %s23, 3
      %s25 = scalar_select %p24, 0, %s23
      %s26 = sadd.s32 1, %s17
      %s27 = scalar_select %p24, %s26, %s17
      %p28 = scmp.ge.s32.totalorder %s27, 2
      %s29 = scalar_select %p28, 0, %s27
      %s30 = ssub.s32 %s18, %s25
      %s31 = ssub.s32 %s17, %s29
      %s32 = sor.u32 %s30, %s31
      %p33 = scmp.eq.s32.totalorder %s32, 0
      %s35 = sadd.s32 %s34, 1
      %s36 = scalar_select %p33, %s34, %s35
      %p39 = pneg %p33
      %p40 = scmp.eq.s32.totalorder %s10, 5
      %p41 = por %p39, %p40
      %p42 = scmp.ne.s32.totalorder %s34, %s37
      %p43 = scmp.eq.s32.totalorder %s10, 0
      %p44 = por %p42, %p43
      %p45 = scmp.ne.s32.totalorder %s34, %s37
      %p46 = scmp.eq.s32.totalorder %s15, 5
      %p47 = por %p45, %p46
      %p48 = scmp.ne.s32.totalorder %s37, %s38
      %p49 = scmp.eq.s32.totalorder %s15, 0
      %p50 = por %p48, %p49
      %p51 = scmp.ne.s32.totalorder %s37, %s38
      %p52 = scmp.eq.s32.totalorder %s16, 5
      %p53 = por %p51, %p52
      %p55 = scmp.ne.s32.totalorder %s38, %s54
      %p56 = scmp.eq.s32.totalorder %s16, 0
      %p57 = por %p55, %p56
      %s58 = ssub.s32 %s18, %s25
      %p59 = scmp.eq.s32.totalorder %s58, 0
      %s61 = sadd.s32 %s60, 1
      %s62 = scalar_select %p59, %s60, %s61
      %p65 = pneg %p59
      %p66 = scmp.eq.s32.totalorder %s10, 5
      %p67 = por %p65, %p66
      %p68 = scmp.ne.s32.totalorder %s60, %s63
      %p69 = scmp.eq.s32.totalorder %s10, 0
      %p70 = por %p68, %p69
      %p71 = scmp.ne.s32.totalorder %s60, %s63
      %p72 = scmp.eq.s32.totalorder %s15, 5
      %p73 = por %p71, %p72
      %p74 = scmp.ne.s32.totalorder %s63, %s64
      %p75 = scmp.eq.s32.totalorder %s15, 0
      %p76 = por %p74, %p75
      %p77 = scmp.ne.s32.totalorder %s63, %s64
      %p78 = scmp.eq.s32.totalorder %s16, 5
      %p79 = por %p77, %p78
      %p81 = scmp.ne.s32.totalorder %s64, %s80
      %p82 = scmp.eq.s32.totalorder %s16, 0
      %p83 = por %p81, %p82
      %s84 = ssub.s32 %s18, %s25
      %p85 = scmp.eq.s32.totalorder %s84, 0
      %s87 = sadd.s32 %s86, 1
      %s88 = scalar_select %p85, %s86, %s87
      %p91 = pneg %p85
      %p92 = scmp.eq.s32.totalorder %s10, 5
      %p93 = por %p91, %p92
      %p94 = scmp.ne.s32.totalorder %s86, %s89
      %p95 = scmp.eq.s32.totalorder %s10, 0
      %p96 = por %p94, %p95
      %p97 = scmp.ne.s32.totalorder %s86, %s89
      %p98 = scmp.eq.s32.totalorder %s15, 5
      %p99 = por %p97, %p98
      %p100 = scmp.ne.s32.totalorder %s89, %s90
      %p101 = scmp.eq.s32.totalorder %s15, 0
      %p102 = por %p100, %p101
      %p103 = scmp.ne.s32.totalorder %s89, %s90
      %p104 = scmp.eq.s32.totalorder %s16, 5
      %p105 = por %p103, %p104
      %p107 = scmp.ne.s32.totalorder %s90, %s106
      %p108 = scmp.eq.s32.totalorder %s16, 0
      %p109 = por %p107, %p108
      %s110 = ssub.s32 %s17, %s29
      %p111 = scmp.eq.s32.totalorder %s110, 0
      %s113 = sadd.s32 %s112, 1
      %s114 = scalar_select %p111, %s112, %s113
      %p117 = pneg %p111
      %p118 = scmp.eq.s32.totalorder %s10, 5
      %p119 = por %p117, %p118
      %p120 = scmp.ne.s32.totalorder %s112, %s115
      %p121 = scmp.eq.s32.totalorder %s10, 0
      %p122 = por %p120, %p121
      %p123 = scmp.ne.s32.totalorder %s112, %s115
      %p124 = scmp.eq.s32.totalorder %s15, 5
      %p125 = por %p123, %p124
      %p126 = scmp.ne.s32.totalorder %s115, %s116
      %p127 = scmp.eq.s32.totalorder %s15, 0
      %p128 = por %p126, %p127
      %p129 = scmp.ne.s32.totalorder %s115, %s116
      %p130 = scmp.eq.s32.totalorder %s16, 5
      %p131 = por %p129, %p130
      %p133 = scmp.ne.s32.totalorder %s116, %s132
      %p134 = scmp.eq.s32.totalorder %s16, 0
      %p135 = por %p133, %p134
      %s136 = ssub.s32 %s17, %s29
      %p137 = scmp.eq.s32.totalorder %s136, 0
      %s139 = sadd.s32 %s138, 1
      %s140 = scalar_select %p137, %s138, %s139
      %p143 = pneg %p137
      %p144 = scmp.eq.s32.totalorder %s10, 5
      %p145 = por %p143, %p144
      %p146 = scmp.ne.s32.totalorder %s138, %s141
      %p147 = scmp.eq.s32.totalorder %s10, 0
      %p148 = por %p146, %p147
      %p149 = scmp.ne.s32.totalorder %s138, %s141
      %p150 = scmp.eq.s32.totalorder %s15, 5
      %p151 = por %p149, %p150
      %p152 = scmp.ne.s32.totalorder %s141, %s142
      %p153 = scmp.eq.s32.totalorder %s15, 0
      %p154 = por %p152, %p153
      %p155 = scmp.ne.s32.totalorder %s141, %s142
      %p156 = scmp.eq.s32.totalorder %s16, 5
      %p157 = por %p155, %p156
      %p159 = scmp.ne.s32.totalorder %s142, %s158
      %p160 = scmp.eq.s32.totalorder %s16, 0
      %p161 = por %p159, %p160
      %p162 = scmp.le.s32.totalorder 1, %s10
      %p163 = scmp.lt.s32.totalorder %s10, 7
      %p164 = pnand %p162, %p163
      %p165 = pneg %p164
      // Predicated region
      $region9: #{centroid_estimator_forward.1} parent=5 // pred_check
        _
      $region10: #{centroid_estimator_forward.1} parent=5 // pred_check_branch
        %167 = sbr.rel (%p164) target = $region12
      $region11: #{centroid_estimator_forward.1} parent=5 // pred_region
        %s168 = ssub.s32 %s10, 1
      $region12: #{centroid_estimator_forward.1} parent=5 // pred_fallthru
        _
      %p169 = scmp.lt.s32.totalorder %s10, 6
      // Predicated region
      $region13: #{centroid_estimator_forward.1} parent=5 // pred_check
        %p170 = pneg %p169
      $region14: #{centroid_estimator_forward.1} parent=5 // pred_check_branch
        %172 = sbr.rel (%p170) target = $region16
      $region15: #{centroid_estimator_forward.1} parent=5 // pred_region
        // Predicated region
        $region17: #{centroid_estimator_forward.1} parent=15 // pred_check
          %p173 = pneg %p44
        $region18: #{centroid_estimator_forward.1} parent=15 // pred_check_branch
          %175 = sbr.rel (%p173) target = $region20
        $region19: #{centroid_estimator_forward.1} parent=15 // pred_region
          %s176 = sand.u32 %s34, 1
          %s177 = sand.u32 %s34, 1
          %s178 = smul.addr %s177, 16
          %s179 = scalar_lea.vmem [#allocation3], %s178
          %s180 = smul.u32 4, %s18
          %s181 = ssub.s32 10, %s180
          %p182 = scmp.lt.s32.totalorder %s181, 4
          %s183 = scalar_select %p182, %s181, 4
          %s184 = smul.u32 4, %s183
          %p185 = scmp.ne.s32.totalorder 0, %s184
          %s186 = smul.addr %s180, 2
          %s187 = sadd.s32 %s17, %s186
          %s188 = smul.addr %s187, 4
          %s189 = scalar_lea.vmem %s0, %s188
          // Predicated region
          $region21: #{centroid_estimator_forward.1} parent=19 // pred_check
            %p190 = pneg %p185
          $region22: #{centroid_estimator_forward.1} parent=19 // pred_check_branch
            %192 = sbr.rel (%p190) target = $region24
          $region23: #{centroid_estimator_forward.1} parent=19 // pred_region
            // Predicated region
            $region25: #{centroid_estimator_forward.1} parent=23 // pred_check
              _
            $region26: #{centroid_estimator_forward.1} parent=23 // pred_check_branch
              %194 = sbr.rel target = $region28
            $region27: #{centroid_estimator_forward.1} parent=23 // pred_region
              // Predicated region
              $region47: #{centroid_estimator_forward.1} parent=27 // pred_check
                _
              $region48: #{centroid_estimator_forward.1} parent=27 // pred_check_branch
                %250 = sbr.rel (0) target = $region50
              $region49: #{centroid_estimator_forward.1} parent=27 // pred_region
                %s252 = ssub.s32 16, 1
                %s253 = sshrl.u32 %s183, 2
                // While loop
                $region51: #{centroid_estimator_forward.1} parent=49 // loop_pre_header
                  _
                $region52: #{centroid_estimator_forward.1} parent=49 // loop_header
                  %s255 = sphi 0, %s257
                  %p256 = scmp.ge.s32.totalorder %s255, %s253
                  %s260 = sphi 0, %s273
                  %s261 = sphi %s189, %s276
                  %s262 = sphi %s179, %s277
                $region53: #{centroid_estimator_forward.1} parent=49 // loop_header_branch
                  %259 = sbr.rel (%p256) target = $region57
                $region54: #{centroid_estimator_forward.1} parent=49 // loop_body
                  %v263 = vld [vmem:[%s261] sm:%s252]
                  %264 = vst [vmem:[%s262] sm:%s252] %v263
                  %v265 = vld [vmem:[%s261 + $0x8] sm:%s252]
                  %266 = vst [vmem:[%s262 + $0x4] sm:%s252] %v265
                  %v267 = vld [vmem:[%s261 + $0x10] sm:%s252]
                  %268 = vst [vmem:[%s262 + $0x8] sm:%s252] %v267
                  %v269 = vld [vmem:[%s261 + $0x18] sm:%s252]
                  %270 = vst [vmem:[%s262 + $0xc] sm:%s252] %v269
                  %s271 = sadd.s32 1, %s260
                  %p272 = scmp.ge.s32.totalorder %s271, %s253
                  %s273 = scalar_select %p272, 0, %s271
                  %s274 = smul.u32 %s273, 32
                  %s275 = smul.u32 %s273, 16
                  %s276 = scalar_lea.vmem %s189, %s274
                  %s277 = scalar_lea.vmem %s179, %s275 [#allocation3]
                $region55: #{centroid_estimator_forward.1} parent=49 // loop_footer
                  %s257 = sadd.s32 %s255, 1
                $region56: #{centroid_estimator_forward.1} parent=49 // loop_footer_branch
                  %254 = sbr.rel target = $region52
                $region57: #{centroid_estimator_forward.1} parent=49 // loop_exit
                  _
                %s278 = sshrl.u32 %s183, 2
                %s279 = sand.u32 %s183, 3
                %s280 = smul.u32 %s278, 4
                %s281 = smul.u32 8, %s280
                %s282 = scalar_lea.vmem %s189, %s281
                %s283 = smul.u32 4, %s280
                %s284 = scalar_lea.vmem %s179, %s283 [#allocation3]
                // While loop
                $region58: #{centroid_estimator_forward.1} parent=49 // loop_pre_header
                  _
                $region59: #{centroid_estimator_forward.1} parent=49 // loop_header
                  %s286 = sphi 0, %s288
                  %p287 = scmp.ge.s32.totalorder %s286, %s279
                  %s291 = sphi 0, %s298
                  %s292 = sphi %s282, %s301
                  %s293 = sphi %s284, %s302
                $region60: #{centroid_estimator_forward.1} parent=49 // loop_header_branch
                  %290 = sbr.rel (%p287) target = $region64
                $region61: #{centroid_estimator_forward.1} parent=49 // loop_body
                  %v294 = vld [vmem:[%s292] sm:%s252]
                  %295 = vst [vmem:[%s293] sm:%s252] %v294
                  %s296 = sadd.s32 1, %s291
                  %p297 = scmp.ge.s32.totalorder %s296, %s279
                  %s298 = scalar_select %p297, 0, %s296
                  %s299 = smul.u32 %s298, 8
                  %s300 = smul.u32 %s298, 4
                  %s301 = scalar_lea.vmem %s282, %s299
                  %s302 = scalar_lea.vmem %s284, %s300 [#allocation3]
                $region62: #{centroid_estimator_forward.1} parent=49 // loop_footer
                  %s288 = sadd.s32 %s286, 1
                $region63: #{centroid_estimator_forward.1} parent=49 // loop_footer_branch
                  %285 = sbr.rel target = $region59
                $region64: #{centroid_estimator_forward.1} parent=49 // loop_exit
                  _
              $region50: #{centroid_estimator_forward.1} parent=27 // pred_fallthru
                _
            $region28: #{centroid_estimator_forward.1} parent=23 // pred_fallthru
              _
            // Predicated region
            $region29: #{centroid_estimator_forward.1} parent=23 // pred_check
              _
            $region30: #{centroid_estimator_forward.1} parent=23 // pred_check_branch
              %196 = sbr.rel (0) target = $region32
            $region31: #{centroid_estimator_forward.1} parent=23 // pred_region
              %s198 = ssub.s32 16, 1
              %s199 = sshrl.u32 %s183, 2
              // While loop
              $region33: #{centroid_estimator_forward.1} parent=31 // loop_pre_header
                _
              $region34: #{centroid_estimator_forward.1} parent=31 // loop_header
                %s201 = sphi 0, %s203
                %p202 = scmp.ge.s32.totalorder %s201, %s199
                %s206 = sphi 0, %s219
                %s207 = sphi %s189, %s222
                %s208 = sphi %s179, %s223
              $region35: #{centroid_estimator_forward.1} parent=31 // loop_header_branch
                %205 = sbr.rel (%p202) target = $region39
              $region36: #{centroid_estimator_forward.1} parent=31 // loop_body
                %v209 = vld [vmem:[%s207] sm:%s198]
                %210 = vst [vmem:[%s208] sm:%s198] %v209
                %v211 = vld [vmem:[%s207 + $0x8] sm:%s198]
                %212 = vst [vmem:[%s208 + $0x4] sm:%s198] %v211
                %v213 = vld [vmem:[%s207 + $0x10] sm:%s198]
                %214 = vst [vmem:[%s208 + $0x8] sm:%s198] %v213
                %v215 = vld [vmem:[%s207 + $0x18] sm:%s198]
                %216 = vst [vmem:[%s208 + $0xc] sm:%s198] %v215
                %s217 = sadd.s32 1, %s206
                %p218 = scmp.ge.s32.totalorder %s217, %s199
                %s219 = scalar_select %p218, 0, %s217
                %s220 = smul.u32 %s219, 32
                %s221 = smul.u32 %s219, 16
                %s222 = scalar_lea.vmem %s189, %s220
                %s223 = scalar_lea.vmem %s179, %s221 [#allocation3]
              $region37: #{centroid_estimator_forward.1} parent=31 // loop_footer
                %s203 = sadd.s32 %s201, 1
              $region38: #{centroid_estimator_forward.1} parent=31 // loop_footer_branch
                %200 = sbr.rel target = $region34
              $region39: #{centroid_estimator_forward.1} parent=31 // loop_exit
                _
              %s224 = sshrl.u32 %s183, 2
              %s225 = sand.u32 %s183, 3
              %s226 = smul.u32 %s224, 4
              %s227 = smul.u32 8, %s226
              %s228 = scalar_lea.vmem %s189, %s227
              %s229 = smul.u32 4, %s226
              %s230 = scalar_lea.vmem %s179, %s229 [#allocation3]
              // While loop
              $region40: #{centroid_estimator_forward.1} parent=31 // loop_pre_header
                _
              $region41: #{centroid_estimator_forward.1} parent=31 // loop_header
                %s232 = sphi 0, %s234
                %p233 = scmp.ge.s32.totalorder %s232, %s225
                %s237 = sphi 0, %s244
                %s238 = sphi %s228, %s247
                %s239 = sphi %s230, %s248
              $region42: #{centroid_estimator_forward.1} parent=31 // loop_header_branch
                %236 = sbr.rel (%p233) target = $region46
              $region43: #{centroid_estimator_forward.1} parent=31 // loop_body
                %v240 = vld [vmem:[%s238] sm:%s198]
                %241 = vst [vmem:[%s239] sm:%s198] %v240
                %s242 = sadd.s32 1, %s237
                %p243 = scmp.ge.s32.totalorder %s242, %s225
                %s244 = scalar_select %p243, 0, %s242
                %s245 = smul.u32 %s244, 8
                %s246 = smul.u32 %s244, 4
                %s247 = scalar_lea.vmem %s228, %s245
                %s248 = scalar_lea.vmem %s230, %s246 [#allocation3]
              $region44: #{centroid_estimator_forward.1} parent=31 // loop_footer
                %s234 = sadd.s32 %s232, 1
              $region45: #{centroid_estimator_forward.1} parent=31 // loop_footer_branch
                %231 = sbr.rel target = $region41
              $region46: #{centroid_estimator_forward.1} parent=31 // loop_exit
                _
            $region32: #{centroid_estimator_forward.1} parent=23 // pred_fallthru
              _
          $region24: #{centroid_estimator_forward.1} parent=19 // pred_fallthru
            _
          %303 = vnop
        $region20: #{centroid_estimator_forward.1} parent=15 // pred_fallthru
          _
        // Predicated region
        $region65: #{centroid_estimator_forward.1} parent=15 // pred_check
          %p304 = pneg %p70
        $region66: #{centroid_estimator_forward.1} parent=15 // pred_check_branch
          %306 = sbr.rel (%p304) target = $region68
        $region67: #{centroid_estimator_forward.1} parent=15 // pred_region
          %s307 = smul.u32 4, %s18
          %s308 = ssub.s32 10, %s307
          %p309 = scmp.lt.s32.totalorder %s308, 4
          %s310 = scalar_select %p309, %s308, 4
          %s311 = smul.u32 4, %s310
          %p312 = scmp.lt.s32.totalorder %s307, 9
          %s313 = scalar_select %p312, %s307, 9
          %s314 = smul.addr %s313, 4
          %s315 = scalar_lea.vmem %s1, %s314
          %s316 = smul.u32 4, %s18
          %s317 = ssub.s32 10, %s316
          %p318 = scmp.lt.s32.totalorder %s317, 4
          %s319 = scalar_select %p318, %s317, 4
          %s320 = smul.u32 4, %s319
        $region68: #{centroid_estimator_forward.1} parent=15 // pred_fallthru
          _
        // Predicated region
        $region69: #{centroid_estimator_forward.1} parent=15 // pred_check
          %p321 = pneg %p96
        $region70: #{centroid_estimator_forward.1} parent=15 // pred_check_branch
          %323 = sbr.rel (%p321) target = $region72
        $region71: #{centroid_estimator_forward.1} parent=15 // pred_region
          %s324 = smul.u32 4, %s18
          %s325 = ssub.s32 10, %s324
          %p326 = scmp.lt.s32.totalorder %s325, 4
          %s327 = scalar_select %p326, %s325, 4
          %s328 = smul.u32 8, %s327
          %p329 = scmp.lt.s32.totalorder %s324, 9
          %s330 = scalar_select %p329, %s324, 9
          %s331 = smul.addr %s330, 8
          %s332 = scalar_lea.vmem %s2, %s331
          %s333 = smul.u32 4, %s18
          %s334 = ssub.s32 10, %s333
          %p335 = scmp.lt.s32.totalorder %s334, 4
          %s336 = scalar_select %p335, %s334, 4
          %s337 = smul.u32 8, %s336
        $region72: #{centroid_estimator_forward.1} parent=15 // pred_fallthru
          _
        // Predicated region
        $region73: #{centroid_estimator_forward.1} parent=15 // pred_check
          %p338 = pneg %p122
        $region74: #{centroid_estimator_forward.1} parent=15 // pred_check_branch
          %340 = sbr.rel (%p338) target = $region76
        $region75: #{centroid_estimator_forward.1} parent=15 // pred_region
          %s341 = smul.u32 16, %s17
          %p342 = scmp.lt.s32.totalorder %s341, 31
          %s343 = scalar_select %p342, %s341, 31
          %s344 = smul.addr %s343, 4
          %s345 = smul.addr %s344, 8
          %s346 = scalar_lea.vmem %s3, %s345
          %s347 = smul.u32 16, %s17
        $region76: #{centroid_estimator_forward.1} parent=15 // pred_fallthru
          _
      $region16: #{centroid_estimator_forward.1} parent=5 // pred_fallthru
        _
      %p348 = scmp.le.s32.totalorder 1, %s10
      %p349 = scmp.lt.s32.totalorder %s10, 7
      %p350 = pnand %p348, %p349
      %p351 = pneg %p350
      // Predicated region
      $region77: #{centroid_estimator_forward.1} parent=5 // pred_check
        _
      $region78: #{centroid_estimator_forward.1} parent=5 // pred_check_branch
        %353 = sbr.rel (%p350) target = $region80
      $region79: #{centroid_estimator_forward.1} parent=5 // pred_region
        %s354 = ssub.s32 %s10, 1
        %s355 = sand.u32 %s37, 1
        %s356 = sand.u32 %s37, 1
        %s357 = smul.addr %s356, 16
        %s358 = scalar_lea.vmem [#allocation3], %s357
        // Predicated region
        $region81: #{centroid_estimator_forward.1} parent=79 // pred_check
          %p359 = pneg %p50
        $region82: #{centroid_estimator_forward.1} parent=79 // pred_check_branch
          %361 = sbr.rel (%p359) target = $region84
        $region83: #{centroid_estimator_forward.1} parent=79 // pred_region
          _
        $region84: #{centroid_estimator_forward.1} parent=79 // pred_fallthru
          _
        %s362 = sand.u32 %s37, 1
        %s363 = sand.u32 %s37, 1
        %s364 = smul.addr %s363, 16
        %s365 = scalar_lea.vmem [#allocation3], %s364
        %p366 = pneg %p50
        %p367 = pneg %p47
        %s368 = smul.u32 4, %s20
        %s369 = ssub.s32 10, %s368
        %p370 = scmp.lt.s32.totalorder %s369, 4
        %s371 = scalar_select %p370, %s369, 4
        %s372 = smul.u32 4, %s371
        %p373 = scmp.lt.s32.totalorder %s368, 9
        %s374 = scalar_select %p373, %s368, 9
        %s375 = smul.addr %s374, 4
        %s376 = scalar_lea.vmem %s1, %s375
        %p377 = pneg %p76
        %p378 = pneg %p73
        %s379 = smul.u32 4, %s20
        %s380 = ssub.s32 10, %s379
        %p381 = scmp.lt.s32.totalorder %s380, 4
        %s382 = scalar_select %p381, %s380, 4
        %s383 = smul.u32 8, %s382
        %p384 = scmp.lt.s32.totalorder %s379, 9
        %s385 = scalar_select %p384, %s379, 9
        %s386 = smul.addr %s385, 8
        %s387 = scalar_lea.vmem %s2, %s386
        %p388 = pneg %p102
        %p389 = pneg %p99
        %s390 = smul.u32 16, %s19
        %p391 = scmp.lt.s32.totalorder %s390, 31
        %s392 = scalar_select %p391, %s390, 31
        %s393 = smul.addr %s392, 4
        %s394 = smul.addr %s393, 8
        %s395 = scalar_lea.vmem %s3, %s394
        %p396 = pneg %p128
        %p397 = pneg %p125
        %p398 = pneg %p154
        %p399 = pneg %p151
        %s400 = smul.u32 16, %s19
        %p401 = scmp.lt.s32.totalorder %s400, 31
        %s402 = scalar_select %p401, %s400, 31
        %s403 = smul.addr %s402, 4
        %s404 = smul.addr %s403, 8
        %s405 = scalar_lea.vmem %s4, %s404
        %s406 = smul.u32 4, %s20
        %s407 = ssub.s32 10, %s406
        %p408 = scmp.lt.s32.totalorder %s407, 4
        %s409 = scalar_select %p408, %s407, 4
        %s410 = smul.u32 4, %s409
        %s411 = smul.u32 4, %s20
        %s412 = ssub.s32 10, %s411
        %p413 = scmp.lt.s32.totalorder %s412, 4
        %s414 = scalar_select %p413, %s412, 4
        %s415 = smul.u32 4, %s414
        %p416 = scmp.lt.s32.totalorder %s411, 9
        %s417 = scalar_select %p416, %s411, 9
        %s418 = smul.addr %s417, 4
        %s419 = scalar_lea.vmem %s1, %s418
        %s420 = smul.u32 4, %s20
        %s421 = ssub.s32 10, %s420
        %p422 = scmp.lt.s32.totalorder %s421, 4
        %s423 = scalar_select %p422, %s421, 4
        %s424 = smul.u32 4, %s423
        %s425 = smul.u32 4, %s20
        %s426 = ssub.s32 10, %s425
        %p427 = scmp.lt.s32.totalorder %s426, 4
        %s428 = scalar_select %p427, %s426, 4
        %s429 = smul.u32 8, %s428
        %p430 = scmp.lt.s32.totalorder %s425, 9
        %s431 = scalar_select %p430, %s425, 9
        %s432 = smul.addr %s431, 8
        %s433 = scalar_lea.vmem %s2, %s432
        %s434 = smul.u32 4, %s20
        %s435 = ssub.s32 10, %s434
        %p436 = scmp.lt.s32.totalorder %s435, 4
        %s437 = scalar_select %p436, %s435, 4
        %s438 = smul.u32 8, %s437
        %s439 = smul.u32 16, %s19
        %p440 = scmp.lt.s32.totalorder %s439, 31
        %s441 = scalar_select %p440, %s439, 31
        %s442 = smul.addr %s441, 4
        %s443 = smul.addr %s442, 8
        %s444 = scalar_lea.vmem %s3, %s443
        %s445 = smul.u32 16, %s19
        %s446 = smul.u32 16, %s19
        %p447 = scmp.lt.s32.totalorder %s446, 31
        %s448 = scalar_select %p447, %s446, 31
        %s449 = smul.addr %s448, 4
        %s450 = smul.addr %s449, 8
        %s451 = scalar_lea.vmem %s4, %s450
        %s452 = smul.u32 16, %s19
        %p454 = scmp.eq.s32.totalorder %s20, 0
        // Predicated region
        $region85: #{centroid_estimator_forward.1} parent=79 // pred_check
          %p455 = pneg %p454
        $region86: #{centroid_estimator_forward.1} parent=79 // pred_check_branch
          %457 = sbr.rel (%p455) target = $region88
        $region87: #{centroid_estimator_forward.1} parent=79 // pred_region
          %458 = vst [vmem:[%s451] sm:$0xff] 0.0
          %459 = vst [vmem:[%s451 + $0x8] sm:$0xff] 0.0
          %460 = vst [vmem:[%s451 + $0x10] sm:$0xff] 0.0
          %461 = vst [vmem:[%s451 + $0x18] sm:$0xff] 0.0
          %462 = vst [vmem:[%s451 + $0x20] sm:$0xff] 0.0
          %463 = vst [vmem:[%s451 + $0x28] sm:$0xff] 0.0
          %464 = vst [vmem:[%s451 + $0x30] sm:$0xff] 0.0
          %465 = vst [vmem:[%s451 + $0x38] sm:$0xff] 0.0
          %466 = vst [vmem:[%s451 + $0x40] sm:$0xff] 0.0
          %467 = vst [vmem:[%s451 + $0x48] sm:$0xff] 0.0
          %468 = vst [vmem:[%s451 + $0x50] sm:$0xff] 0.0
          %469 = vst [vmem:[%s451 + $0x58] sm:$0xff] 0.0
          %470 = vst [vmem:[%s451 + $0x60] sm:$0xff] 0.0
          %471 = vst [vmem:[%s451 + $0x68] sm:$0xff] 0.0
          %472 = vst [vmem:[%s451 + $0x70] sm:$0xff] 0.0
          %473 = vst [vmem:[%s451 + $0x78] sm:$0xff] 0.0
          %474 = vst [vmem:[%s451 + $0x80] sm:$0xff] 0.0
          %475 = vst [vmem:[%s451 + $0x88] sm:$0xff] 0.0
          %476 = vst [vmem:[%s451 + $0x90] sm:$0xff] 0.0
          %477 = vst [vmem:[%s451 + $0x98] sm:$0xff] 0.0
          %478 = vst [vmem:[%s451 + $0xa0] sm:$0xff] 0.0
          %479 = vst [vmem:[%s451 + $0xa8] sm:$0xff] 0.0
          %480 = vst [vmem:[%s451 + $0xb0] sm:$0xff] 0.0
          %481 = vst [vmem:[%s451 + $0xb8] sm:$0xff] 0.0
          %482 = vst [vmem:[%s451 + $0xc0] sm:$0xff] 0.0
          %483 = vst [vmem:[%s451 + $0xc8] sm:$0xff] 0.0
          %484 = vst [vmem:[%s451 + $0xd0] sm:$0xff] 0.0
          %485 = vst [vmem:[%s451 + $0xd8] sm:$0xff] 0.0
          %486 = vst [vmem:[%s451 + $0xe0] sm:$0xff] 0.0
          %487 = vst [vmem:[%s451 + $0xe8] sm:$0xff] 0.0
          %488 = vst [vmem:[%s451 + $0xf0] sm:$0xff] 0.0
          %489 = vst [vmem:[%s451 + $0xf8] sm:$0xff] 0.0
          %490 = vst [vmem:[%s451 + $0x100] sm:$0xff] 0.0
          %491 = vst [vmem:[%s451 + $0x108] sm:$0xff] 0.0
          %492 = vst [vmem:[%s451 + $0x110] sm:$0xff] 0.0
          %493 = vst [vmem:[%s451 + $0x118] sm:$0xff] 0.0
          %494 = vst [vmem:[%s451 + $0x120] sm:$0xff] 0.0
          %495 = vst [vmem:[%s451 + $0x128] sm:$0xff] 0.0
          %496 = vst [vmem:[%s451 + $0x130] sm:$0xff] 0.0
          %497 = vst [vmem:[%s451 + $0x138] sm:$0xff] 0.0
          %498 = vst [vmem:[%s451 + $0x140] sm:$0xff] 0.0
          %499 = vst [vmem:[%s451 + $0x148] sm:$0xff] 0.0
          %500 = vst [vmem:[%s451 + $0x150] sm:$0xff] 0.0
          %501 = vst [vmem:[%s451 + $0x158] sm:$0xff] 0.0
          %502 = vst [vmem:[%s451 + $0x160] sm:$0xff] 0.0
          %503 = vst [vmem:[%s451 + $0x168] sm:$0xff] 0.0
          %504 = vst [vmem:[%s451 + $0x170] sm:$0xff] 0.0
          %505 = vst [vmem:[%s451 + $0x178] sm:$0xff] 0.0
          %506 = vst [vmem:[%s451 + $0x180] sm:$0xff] 0.0
          %507 = vst [vmem:[%s451 + $0x188] sm:$0xff] 0.0
          %508 = vst [vmem:[%s451 + $0x190] sm:$0xff] 0.0
          %509 = vst [vmem:[%s451 + $0x198] sm:$0xff] 0.0
          %510 = vst [vmem:[%s451 + $0x1a0] sm:$0xff] 0.0
          %511 = vst [vmem:[%s451 + $0x1a8] sm:$0xff] 0.0
          %512 = vst [vmem:[%s451 + $0x1b0] sm:$0xff] 0.0
          %513 = vst [vmem:[%s451 + $0x1b8] sm:$0xff] 0.0
          %514 = vst [vmem:[%s451 + $0x1c0] sm:$0xff] 0.0
          %515 = vst [vmem:[%s451 + $0x1c8] sm:$0xff] 0.0
          %516 = vst [vmem:[%s451 + $0x1d0] sm:$0xff] 0.0
          %517 = vst [vmem:[%s451 + $0x1d8] sm:$0xff] 0.0
          %518 = vst [vmem:[%s451 + $0x1e0] sm:$0xff] 0.0
          %519 = vst [vmem:[%s451 + $0x1e8] sm:$0xff] 0.0
          %520 = vst [vmem:[%s451 + $0x1f0] sm:$0xff] 0.0
          %521 = vst [vmem:[%s451 + $0x1f8] sm:$0xff] 0.0
          %v522 = vlaneseq
          %vm523 = vcmp.ge.s32.totalorder %v522, 0
          %vm524 = vcmp.lt.s32.totalorder %v522, 512
          %vm525 = vmand %vm523, %vm524
          %526 = vst.msk [vmem:[#allocation2] sm:$0xf] %vm525, 0.0
        $region88: #{centroid_estimator_forward.1} parent=79 // pred_fallthru
          _
        %v527 = vld [vmem:[%s358] sm:$0xf]
        %v528 = vld [vmem:[%s358 + $0x4] sm:$0xf]
        %v529 = vld [vmem:[%s358 + $0x8] sm:$0xf]
        %v530 = vld [vmem:[%s358 + $0xc] sm:$0xf]
        %v531 = vld [vmem:[%s419] sm:$0xf]
        %v532 = vld [vmem:[%s419 + $0x4] sm:$0xf]
        %v533 = vld [vmem:[%s419 + $0x8] sm:$0xf]
        %v534 = vld [vmem:[%s419 + $0xc] sm:$0xf]
        %v535 = vld [vmem:[%s433] sm:$0xff]
        %v536 = vld [vmem:[%s433 + $0x8] sm:$0xff]
        %v537 = vld [vmem:[%s433 + $0x10] sm:$0xff]
        %v538 = vld [vmem:[%s433 + $0x18] sm:$0xff]
        %s539 = smul.u32 %s20, 32
        %v540 = vlaneseq
        %v541 = vshrl.u32 %v540, 7
        %v542 = vadd.s32 %v541, 8
        %v543 = vadd.s32 %v541, 16
        %v544 = vadd.s32 %v541, 24
        %v545 = vstv %s539
        %v546 = vadd.s32 %v545, %v541
        %v547 = vadd.s32 %v545, %v542
        %v548 = vadd.s32 %v545, %v543
        %v549 = vadd.s32 %v545, %v544
        %vm550 = vcmp.lt.s32.totalorder %v546, 75
        %vm551 = vcmp.lt.s32.totalorder %v547, 75
        %vm552 = vcmp.lt.s32.totalorder %v548, 75
        %vm553 = vcmp.lt.s32.totalorder %v549, 75
        %v554 = vsel %vm550, 1, 0
        %v555 = vsel %vm551, 1, 0
        %v556 = vsel %vm552, 1, 0
        %v557 = vsel %vm553, 1, 0
        %vm558 = vcmp.eq.s32.totalorder %v554, 1
        %vm559 = vcmp.eq.s32.totalorder %v555, 1
        %vm560 = vcmp.eq.s32.totalorder %v556, 1
        %vm561 = vcmp.eq.s32.totalorder %v557, 1
        %vm562 = vmpackc.low %vm558, %vm558
        %vm563 = vmpackc.low %vm559, %vm559
        %vm564 = vmpackc.low %vm560, %vm560
        %vm565 = vmpackc.low %vm561, %vm561
        %v566 = vsel %vm562, %v527, 0
        %v567 = vsel %vm563, %v528, 0
        %v568 = vsel %vm564, %v529, 0
        %v569 = vsel %vm565, %v530, 0
        %v570 = vsel %vm562, %v531, 0
        %v571 = vsel %vm563, %v532, 0
        %v572 = vsel %vm564, %v533, 0
        %v573 = vsel %vm565, %v534, 0
        %vm574 = vcmp.eq.s32.totalorder %v535, 0
        %vm575 = vcmp.eq.s32.totalorder %v536, 0
        %vm576 = vcmp.eq.s32.totalorder %v537, 0
        %vm577 = vcmp.eq.s32.totalorder %v538, 0
        %vm578 = vmand %vm574, %vm550
        %vm579 = vmand %vm575, %vm551
        %vm580 = vmand %vm576, %vm552
        %vm581 = vmand %vm577, %vm553
        %v582 = vsel %vm578, 1, 0
        %v583 = vsel %vm579, 1, 0
        %v584 = vsel %vm580, 1, 0
        %v585 = vsel %vm581, 1, 0
        %586 = vset.pattern.permute.xlu0 0
        %587 = vperm.xlu0 %586, %v582
        %v588 = vpop.permute.xlu0 %587
        %589 = vset.pattern.permute.xlu0 0
        %590 = vperm.xlu0 %589, %v583
        %v591 = vpop.permute.xlu0 %590
        %592 = vset.pattern.permute.xlu0 0
        %593 = vperm.xlu0 %592, %v584
        %v594 = vpop.permute.xlu0 %593
        %595 = vset.pattern.permute.xlu0 0
        %596 = vperm.xlu0 %595, %v585
        %v597 = vpop.permute.xlu0 %596
        %vm598 = vcmp.eq.s32.totalorder %v588, 1
        %vm599 = vcmp.eq.s32.totalorder %v591, 1
        %vm600 = vcmp.eq.s32.totalorder %v594, 1
        %vm601 = vcmp.eq.s32.totalorder %v597, 1
        %vm602 = vmpackc.low %vm598, %vm598
        %vm603 = vmpackc.low %vm599, %vm599
        %vm604 = vmpackc.low %vm600, %vm600
        %vm605 = vmpackc.low %vm601, %vm601
        %v606 = vsel %vm602, %v531, 0
        %v607 = vsel %vm603, %v532, 0
        %v608 = vsel %vm604, %v533, 0
        %v609 = vsel %vm605, %v534, 0
        %vm610 = vcmp.eq.s32.totalorder %v535, 1
        %vm611 = vcmp.eq.s32.totalorder %v536, 1
        %vm612 = vcmp.eq.s32.totalorder %v537, 1
        %vm613 = vcmp.eq.s32.totalorder %v538, 1
        %vm614 = vmand %vm610, %vm550
        %vm615 = vmand %vm611, %vm551
        %vm616 = vmand %vm612, %vm552
        %vm617 = vmand %vm613, %vm553
        %v618 = vsel %vm614, 1, 0
        %v619 = vsel %vm615, 1, 0
        %v620 = vsel %vm616, 1, 0
        %v621 = vsel %vm617, 1, 0
        %622 = vset.pattern.permute.xlu0 0
        %623 = vperm.xlu0 %622, %v618
        %v624 = vpop.permute.xlu0 %623
        %625 = vset.pattern.permute.xlu0 0
        %626 = vperm.xlu0 %625, %v619
        %v627 = vpop.permute.xlu0 %626
        %628 = vset.pattern.permute.xlu0 0
        %629 = vperm.xlu0 %628, %v620
        %v630 = vpop.permute.xlu0 %629
        %631 = vset.pattern.permute.xlu0 0
        %632 = vperm.xlu0 %631, %v621
        %v633 = vpop.permute.xlu0 %632
        %vm634 = vcmp.eq.s32.totalorder %v624, 1
        %vm635 = vcmp.eq.s32.totalorder %v627, 1
        %vm636 = vcmp.eq.s32.totalorder %v630, 1
        %vm637 = vcmp.eq.s32.totalorder %v633, 1
        %vm638 = vmpackc.low %vm634, %vm634
        %vm639 = vmpackc.low %vm635, %vm635
        %vm640 = vmpackc.low %vm636, %vm636
        %vm641 = vmpackc.low %vm637, %vm637
        %v642 = vsel %vm638, %v531, 0
        %v643 = vsel %vm639, %v532, 0
        %v644 = vsel %vm640, %v533, 0
        %v645 = vsel %vm641, %v534, 0
        %vm646 = vcmp.eq.s32.totalorder %v535, 2
        %vm647 = vcmp.eq.s32.totalorder %v536, 2
        %vm648 = vcmp.eq.s32.totalorder %v537, 2
        %vm649 = vcmp.eq.s32.totalorder %v538, 2
        %vm650 = vmand %vm646, %vm550
        %vm651 = vmand %vm647, %vm551
        %vm652 = vmand %vm648, %vm552
        %vm653 = vmand %vm649, %vm553
        %v654 = vsel %vm650, 1, 0
        %v655 = vsel %vm651, 1, 0
        %v656 = vsel %vm652, 1, 0
        %v657 = vsel %vm653, 1, 0
        %658 = vset.pattern.permute.xlu0 0
        %659 = vperm.xlu0 %658, %v654
        %v660 = vpop.permute.xlu0 %659
        %661 = vset.pattern.permute.xlu0 0
        %662 = vperm.xlu0 %661, %v655
        %v663 = vpop.permute.xlu0 %662
        %664 = vset.pattern.permute.xlu0 0
        %665 = vperm.xlu0 %664, %v656
        %v666 = vpop.permute.xlu0 %665
        %667 = vset.pattern.permute.xlu0 0
        %668 = vperm.xlu0 %667, %v657
        %v669 = vpop.permute.xlu0 %668
        %vm670 = vcmp.eq.s32.totalorder %v660, 1
        %vm671 = vcmp.eq.s32.totalorder %v663, 1
        %vm672 = vcmp.eq.s32.totalorder %v666, 1
        %vm673 = vcmp.eq.s32.totalorder %v669, 1
        %vm674 = vmpackc.low %vm670, %vm670
        %vm675 = vmpackc.low %vm671, %vm671
        %vm676 = vmpackc.low %vm672, %vm672
        %vm677 = vmpackc.low %vm673, %vm673
        %v678 = vsel %vm674, %v531, 0
        %v679 = vsel %vm675, %v532, 0
        %v680 = vsel %vm676, %v533, 0
        %v681 = vsel %vm677, %v534, 0
        %v686 = vunpack.c.l.b16 %v570
        %v687 = vunpack.c.l.b16 %v571
        %v688 = vunpack.c.l.b16 %v572
        %v689 = vunpack.c.l.b16 %v573
        %v690 = vpack.c.b16 %v687, %v686
        %v691 = vpack.c.b16 %v689, %v688
        %v698 = vunpack.c.l.b16 %v606
        %v699 = vunpack.c.l.b16 %v607
        %v700 = vunpack.c.l.b16 %v608
        %v701 = vunpack.c.l.b16 %v609
        %v702 = vpack.c.b16 %v699, %v698
        %v703 = vpack.c.b16 %v701, %v700
        %v710 = vunpack.c.l.b16 %v642
        %v711 = vunpack.c.l.b16 %v643
        %v712 = vunpack.c.l.b16 %v644
        %v713 = vunpack.c.l.b16 %v645
        %v714 = vpack.c.b16 %v711, %v710
        %v715 = vpack.c.b16 %v713, %v712
        %v722 = vunpack.c.l.b16 %v678
        %v723 = vunpack.c.l.b16 %v679
        %v724 = vunpack.c.l.b16 %v680
        %v725 = vunpack.c.l.b16 %v681
        %v726 = vpack.c.b16 %v723, %v722
        %v727 = vpack.c.b16 %v725, %v724
        %v730 = vld [vmem:[%s451] sm:$0xff]
        %v731 = vld [vmem:[%s451 + $0x8] sm:$0xff]
        %v732 = vld [vmem:[%s451 + $0x10] sm:$0xff]
        %v733 = vld [vmem:[%s451 + $0x18] sm:$0xff]
        %v734 = vld [vmem:[%s451 + $0x20] sm:$0xff]
        %v735 = vld [vmem:[%s451 + $0x28] sm:$0xff]
        %v736 = vld [vmem:[%s451 + $0x30] sm:$0xff]
        %v737 = vld [vmem:[%s451 + $0x38] sm:$0xff]
        %v738 = vld [vmem:[%s451 + $0x40] sm:$0xff]
        %v739 = vld [vmem:[%s451 + $0x48] sm:$0xff]
        %v740 = vld [vmem:[%s451 + $0x50] sm:$0xff]
        %v741 = vld [vmem:[%s451 + $0x58] sm:$0xff]
        %v742 = vld [vmem:[%s451 + $0x60] sm:$0xff]
        %v743 = vld [vmem:[%s451 + $0x68] sm:$0xff]
        %v744 = vld [vmem:[%s451 + $0x70] sm:$0xff]
        %v745 = vld [vmem:[%s451 + $0x78] sm:$0xff]
        %v746 = vld [vmem:[%s451 + $0x80] sm:$0xff]
        %v747 = vld [vmem:[%s451 + $0x88] sm:$0xff]
        %v748 = vld [vmem:[%s451 + $0x90] sm:$0xff]
        %v749 = vld [vmem:[%s451 + $0x98] sm:$0xff]
        %v750 = vld [vmem:[%s451 + $0xa0] sm:$0xff]
        %v751 = vld [vmem:[%s451 + $0xa8] sm:$0xff]
        %v752 = vld [vmem:[%s451 + $0xb0] sm:$0xff]
        %v753 = vld [vmem:[%s451 + $0xb8] sm:$0xff]
        %v754 = vld [vmem:[%s451 + $0xc0] sm:$0xff]
        %v755 = vld [vmem:[%s451 + $0xc8] sm:$0xff]
        %v756 = vld [vmem:[%s451 + $0xd0] sm:$0xff]
        %v757 = vld [vmem:[%s451 + $0xd8] sm:$0xff]
        %v758 = vld [vmem:[%s451 + $0xe0] sm:$0xff]
        %v759 = vld [vmem:[%s451 + $0xe8] sm:$0xff]
        %v760 = vld [vmem:[%s451 + $0xf0] sm:$0xff]
        %v761 = vld [vmem:[%s451 + $0xf8] sm:$0xff]
        %v762 = vld [vmem:[%s451 + $0x100] sm:$0xff]
        %v763 = vld [vmem:[%s451 + $0x108] sm:$0xff]
        %v764 = vld [vmem:[%s451 + $0x110] sm:$0xff]
        %v765 = vld [vmem:[%s451 + $0x118] sm:$0xff]
        %v766 = vld [vmem:[%s451 + $0x120] sm:$0xff]
        %v767 = vld [vmem:[%s451 + $0x128] sm:$0xff]
        %v768 = vld [vmem:[%s451 + $0x130] sm:$0xff]
        %v769 = vld [vmem:[%s451 + $0x138] sm:$0xff]
        %v770 = vld [vmem:[%s451 + $0x140] sm:$0xff]
        %v771 = vld [vmem:[%s451 + $0x148] sm:$0xff]
        %v772 = vld [vmem:[%s451 + $0x150] sm:$0xff]
        %v773 = vld [vmem:[%s451 + $0x158] sm:$0xff]
        %v774 = vld [vmem:[%s451 + $0x160] sm:$0xff]
        %v775 = vld [vmem:[%s451 + $0x168] sm:$0xff]
        %v776 = vld [vmem:[%s451 + $0x170] sm:$0xff]
        %v777 = vld [vmem:[%s451 + $0x178] sm:$0xff]
        %v778 = vld [vmem:[%s451 + $0x180] sm:$0xff]
        %v779 = vld [vmem:[%s451 + $0x188] sm:$0xff]
        %v780 = vld [vmem:[%s451 + $0x190] sm:$0xff]
        %v781 = vld [vmem:[%s451 + $0x198] sm:$0xff]
        %v782 = vld [vmem:[%s451 + $0x1a0] sm:$0xff]
        %v783 = vld [vmem:[%s451 + $0x1a8] sm:$0xff]
        %v784 = vld [vmem:[%s451 + $0x1b0] sm:$0xff]
        %v785 = vld [vmem:[%s451 + $0x1b8] sm:$0xff]
        %v786 = vld [vmem:[%s451 + $0x1c0] sm:$0xff]
        %v787 = vld [vmem:[%s451 + $0x1c8] sm:$0xff]
        %v788 = vld [vmem:[%s451 + $0x1d0] sm:$0xff]
        %v789 = vld [vmem:[%s451 + $0x1d8] sm:$0xff]
        %v790 = vld [vmem:[%s451 + $0x1e0] sm:$0xff]
        %v791 = vld [vmem:[%s451 + $0x1e8] sm:$0xff]
        %v792 = vld [vmem:[%s451 + $0x1f0] sm:$0xff]
        %v793 = vld [vmem:[%s451 + $0x1f8] sm:$0xff]
        %v798 = vunpack.c.l.b16 %v566
        %v799 = vunpack.c.l.b16 %v567
        %v800 = vunpack.c.l.b16 %v568
        %v801 = vunpack.c.l.b16 %v569
        %v802 = vpack.c.b16 %v799, %v798
        %v803 = vpack.c.b16 %v801, %v800
        %806 = vxpose.xlu0.c.b16.start [1/8] %v802, 128
        %807 = vxpose.xlu0.c.b16.cont [2/8] %v803, 128
        %808 = vxpose.xlu0.c.b16.cont [3/8] 0, 128
        %809 = vxpose.xlu0.c.b16.cont [4/8] 0, 128
        %810 = vxpose.xlu0.c.b16.cont [5/8] 0, 128
        %811 = vxpose.xlu0.c.b16.cont [6/8] 0, 128
        %812 = vxpose.xlu0.c.b16.cont [7/8] 0, 128
        %813 = vxpose.xlu0.c.b16.end [8/8] 0, 128
        %v814 = vpop.trf.xlu0
        %v815 = vpop.trf.xlu0
        %v816 = vpop.trf.xlu0
        %v817 = vpop.trf.xlu0
        %v818 = vpop.trf.xlu0
        %v819 = vpop.trf.xlu0
        %v820 = vpop.trf.xlu0
        %v821 = vpop.trf.xlu0
        %vm822 = vcmask 261120
        %v824 = vsel %vm822, %v814, 0
        %v827 = vsel %vm822, %v815, 0
        %v830 = vsel %vm822, %v816, 0
        %v833 = vsel %vm822, %v817, 0
        %v836 = vsel %vm822, %v818, 0
        %v839 = vsel %vm822, %v819, 0
        %v842 = vsel %vm822, %v820, 0
        %v845 = vsel %vm822, %v821, 0
        %847 = vmatpush.bf16.msra.mxu0 0
        %848 = vmatpush.bf16.msra.mxu0 0
        %849 = vmatpush.bf16.msra.mxu0 0
        %850 = vmatpush.bf16.msra.mxu0 0
        %851 = vmatpush.bf16.msra.mxu0 0
        %852 = vmatpush.bf16.msra.mxu0 0
        %853 = vmatpush.bf16.msra.mxu0 %v691
        %854 = vmatpush.bf16.msra.mxu0 %v690
        %855 = vmatmul.bf16.gmra.mxu0 %v824
        %v856 = vpop.f32.mrf.mxu0
        %v857 = vadd.f32 0.0, %v856
        %v858 = vpop.f32.mrf.mxu0
        %v859 = vadd.f32 0.0, %v858
        %860 = vmatmul.bf16.gmra.mxu0 %v827
        %v861 = vpop.f32.mrf.mxu0
        %v862 = vadd.f32 0.0, %v861
        %v863 = vpop.f32.mrf.mxu0
        %v864 = vadd.f32 0.0, %v863
        %865 = vmatmul.bf16.gmra.mxu0 %v830
        %v866 = vpop.f32.mrf.mxu0
        %v867 = vadd.f32 0.0, %v866
        %v868 = vpop.f32.mrf.mxu0
        %v869 = vadd.f32 0.0, %v868
        %870 = vmatmul.bf16.gmra.mxu0 %v833
        %v871 = vpop.f32.mrf.mxu0
        %v872 = vadd.f32 0.0, %v871
        %v873 = vpop.f32.mrf.mxu0
        %v874 = vadd.f32 0.0, %v873
        %875 = vmatmul.bf16.gmra.mxu0 %v836
        %v876 = vpop.f32.mrf.mxu0
        %v877 = vadd.f32 0.0, %v876
        %v878 = vpop.f32.mrf.mxu0
        %v879 = vadd.f32 0.0, %v878
        %880 = vmatmul.bf16.gmra.mxu0 %v839
        %v881 = vpop.f32.mrf.mxu0
        %v882 = vadd.f32 0.0, %v881
        %v883 = vpop.f32.mrf.mxu0
        %v884 = vadd.f32 0.0, %v883
        %885 = vmatmul.bf16.gmra.mxu0 %v842
        %v886 = vpop.f32.mrf.mxu0
        %v887 = vadd.f32 0.0, %v886
        %v888 = vpop.f32.mrf.mxu0
        %v889 = vadd.f32 0.0, %v888
        %890 = vmatmul.bf16.gmra.mxu0 %v845
        %v891 = vpop.f32.mrf.mxu0
        %v892 = vadd.f32 0.0, %v891
        %v893 = vpop.f32.mrf.mxu0
        %v894 = vadd.f32 0.0, %v893
        %895 = vdwg.mxu0
        %896 = vmatpush.bf16.msra.mxu0 0
        %897 = vmatpush.bf16.msra.mxu0 0
        %898 = vmatpush.bf16.msra.mxu0 0
        %899 = vmatpush.bf16.msra.mxu0 0
        %900 = vmatpush.bf16.msra.mxu0 0
        %901 = vmatpush.bf16.msra.mxu0 0
        %902 = vmatpush.bf16.msra.mxu0 %v703
        %903 = vmatpush.bf16.msra.mxu0 %v702
        %904 = vmatmul.bf16.gmra.mxu0 %v824
        %v905 = vpop.f32.mrf.mxu0
        %v906 = vadd.f32 0.0, %v905
        %v907 = vpop.f32.mrf.mxu0
        %v908 = vadd.f32 0.0, %v907
        %909 = vmatmul.bf16.gmra.mxu0 %v827
        %v910 = vpop.f32.mrf.mxu0
        %v911 = vadd.f32 0.0, %v910
        %v912 = vpop.f32.mrf.mxu0
        %v913 = vadd.f32 0.0, %v912
        %914 = vmatmul.bf16.gmra.mxu0 %v830
        %v915 = vpop.f32.mrf.mxu0
        %v916 = vadd.f32 0.0, %v915
        %v917 = vpop.f32.mrf.mxu0
        %v918 = vadd.f32 0.0, %v917
        %919 = vmatmul.bf16.gmra.mxu0 %v833
        %v920 = vpop.f32.mrf.mxu0
        %v921 = vadd.f32 0.0, %v920
        %v922 = vpop.f32.mrf.mxu0
        %v923 = vadd.f32 0.0, %v922
        %924 = vmatmul.bf16.gmra.mxu0 %v836
        %v925 = vpop.f32.mrf.mxu0
        %v926 = vadd.f32 0.0, %v925
        %v927 = vpop.f32.mrf.mxu0
        %v928 = vadd.f32 0.0, %v927
        %929 = vmatmul.bf16.gmra.mxu0 %v839
        %v930 = vpop.f32.mrf.mxu0
        %v931 = vadd.f32 0.0, %v930
        %v932 = vpop.f32.mrf.mxu0
        %v933 = vadd.f32 0.0, %v932
        %934 = vmatmul.bf16.gmra.mxu0 %v842
        %v935 = vpop.f32.mrf.mxu0
        %v936 = vadd.f32 0.0, %v935
        %v937 = vpop.f32.mrf.mxu0
        %v938 = vadd.f32 0.0, %v937
        %939 = vmatmul.bf16.gmra.mxu0 %v845
        %v940 = vpop.f32.mrf.mxu0
        %v941 = vadd.f32 0.0, %v940
        %v942 = vpop.f32.mrf.mxu0
        %v943 = vadd.f32 0.0, %v942
        %944 = vdwg.mxu0
        %945 = vmatpush.bf16.msra.mxu0 0
        %946 = vmatpush.bf16.msra.mxu0 0
        %947 = vmatpush.bf16.msra.mxu0 0
        %948 = vmatpush.bf16.msra.mxu0 0
        %949 = vmatpush.bf16.msra.mxu0 0
        %950 = vmatpush.bf16.msra.mxu0 0
        %951 = vmatpush.bf16.msra.mxu0 %v715
        %952 = vmatpush.bf16.msra.mxu0 %v714
        %953 = vmatmul.bf16.gmra.mxu0 %v824
        %v954 = vpop.f32.mrf.mxu0
        %v955 = vadd.f32 0.0, %v954
        %v956 = vpop.f32.mrf.mxu0
        %v957 = vadd.f32 0.0, %v956
        %958 = vmatmul.bf16.gmra.mxu0 %v827
        %v959 = vpop.f32.mrf.mxu0
        %v960 = vadd.f32 0.0, %v959
        %v961 = vpop.f32.mrf.mxu0
        %v962 = vadd.f32 0.0, %v961
        %963 = vmatmul.bf16.gmra.mxu0 %v830
        %v964 = vpop.f32.mrf.mxu0
        %v965 = vadd.f32 0.0, %v964
        %v966 = vpop.f32.mrf.mxu0
        %v967 = vadd.f32 0.0, %v966
        %968 = vmatmul.bf16.gmra.mxu0 %v833
        %v969 = vpop.f32.mrf.mxu0
        %v970 = vadd.f32 0.0, %v969
        %v971 = vpop.f32.mrf.mxu0
        %v972 = vadd.f32 0.0, %v971
        %973 = vmatmul.bf16.gmra.mxu0 %v836
        %v974 = vpop.f32.mrf.mxu0
        %v975 = vadd.f32 0.0, %v974
        %v976 = vpop.f32.mrf.mxu0
        %v977 = vadd.f32 0.0, %v976
        %978 = vmatmul.bf16.gmra.mxu0 %v839
        %v979 = vpop.f32.mrf.mxu0
        %v980 = vadd.f32 0.0, %v979
        %v981 = vpop.f32.mrf.mxu0
        %v982 = vadd.f32 0.0, %v981
        %983 = vmatmul.bf16.gmra.mxu0 %v842
        %v984 = vpop.f32.mrf.mxu0
        %v985 = vadd.f32 0.0, %v984
        %v986 = vpop.f32.mrf.mxu0
        %v987 = vadd.f32 0.0, %v986
        %988 = vmatmul.bf16.gmra.mxu0 %v845
        %v989 = vpop.f32.mrf.mxu0
        %v990 = vadd.f32 0.0, %v989
        %v991 = vpop.f32.mrf.mxu0
        %v992 = vadd.f32 0.0, %v991
        %993 = vdwg.mxu0
        %994 = vmatpush.bf16.msra.mxu0 0
        %995 = vmatpush.bf16.msra.mxu0 0
        %996 = vmatpush.bf16.msra.mxu0 0
        %997 = vmatpush.bf16.msra.mxu0 0
        %998 = vmatpush.bf16.msra.mxu0 0
        %999 = vmatpush.bf16.msra.mxu0 0
        %1000 = vmatpush.bf16.msra.mxu0 %v727
        %1001 = vmatpush.bf16.msra.mxu0 %v726
        %1002 = vmatmul.bf16.gmra.mxu0 %v824
        %v1003 = vpop.f32.mrf.mxu0
        %v1004 = vadd.f32 0.0, %v1003
        %v1005 = vpop.f32.mrf.mxu0
        %v1006 = vadd.f32 0.0, %v1005
        %1007 = vmatmul.bf16.gmra.mxu0 %v827
        %v1008 = vpop.f32.mrf.mxu0
        %v1009 = vadd.f32 0.0, %v1008
        %v1010 = vpop.f32.mrf.mxu0
        %v1011 = vadd.f32 0.0, %v1010
        %1012 = vmatmul.bf16.gmra.mxu0 %v830
        %v1013 = vpop.f32.mrf.mxu0
        %v1014 = vadd.f32 0.0, %v1013
        %v1015 = vpop.f32.mrf.mxu0
        %v1016 = vadd.f32 0.0, %v1015
        %1017 = vmatmul.bf16.gmra.mxu0 %v833
        %v1018 = vpop.f32.mrf.mxu0
        %v1019 = vadd.f32 0.0, %v1018
        %v1020 = vpop.f32.mrf.mxu0
        %v1021 = vadd.f32 0.0, %v1020
        %1022 = vmatmul.bf16.gmra.mxu0 %v836
        %v1023 = vpop.f32.mrf.mxu0
        %v1024 = vadd.f32 0.0, %v1023
        %v1025 = vpop.f32.mrf.mxu0
        %v1026 = vadd.f32 0.0, %v1025
        %1027 = vmatmul.bf16.gmra.mxu0 %v839
        %v1028 = vpop.f32.mrf.mxu0
        %v1029 = vadd.f32 0.0, %v1028
        %v1030 = vpop.f32.mrf.mxu0
        %v1031 = vadd.f32 0.0, %v1030
        %1032 = vmatmul.bf16.gmra.mxu0 %v842
        %v1033 = vpop.f32.mrf.mxu0
        %v1034 = vadd.f32 0.0, %v1033
        %v1035 = vpop.f32.mrf.mxu0
        %v1036 = vadd.f32 0.0, %v1035
        %1037 = vmatmul.bf16.gmra.mxu0 %v845
        %v1038 = vpop.f32.mrf.mxu0
        %v1039 = vadd.f32 0.0, %v1038
        %v1040 = vpop.f32.mrf.mxu0
        %v1041 = vadd.f32 0.0, %v1040
        %1042 = vdwg.mxu0
        %v1043 = vadd.f32 %v730, %v857
        %v1044 = vadd.f32 %v731, %v906
        %v1045 = vadd.f32 %v732, %v955
        %v1046 = vadd.f32 %v733, %v1004
        %v1047 = vadd.f32 %v734, %v859
        %v1048 = vadd.f32 %v735, %v908
        %v1049 = vadd.f32 %v736, %v957
        %v1050 = vadd.f32 %v737, %v1006
        %v1051 = vadd.f32 %v738, %v862
        %v1052 = vadd.f32 %v739, %v911
        %v1053 = vadd.f32 %v740, %v960
        %v1054 = vadd.f32 %v741, %v1009
        %v1055 = vadd.f32 %v742, %v864
        %v1056 = vadd.f32 %v743, %v913
        %v1057 = vadd.f32 %v744, %v962
        %v1058 = vadd.f32 %v745, %v1011
        %v1059 = vadd.f32 %v746, %v867
        %v1060 = vadd.f32 %v747, %v916
        %v1061 = vadd.f32 %v748, %v965
        %v1062 = vadd.f32 %v749, %v1014
        %v1063 = vadd.f32 %v750, %v869
        %v1064 = vadd.f32 %v751, %v918
        %v1065 = vadd.f32 %v752, %v967
        %v1066 = vadd.f32 %v753, %v1016
        %v1067 = vadd.f32 %v754, %v872
        %v1068 = vadd.f32 %v755, %v921
        %v1069 = vadd.f32 %v756, %v970
        %v1070 = vadd.f32 %v757, %v1019
        %v1071 = vadd.f32 %v758, %v874
        %v1072 = vadd.f32 %v759, %v923
        %v1073 = vadd.f32 %v760, %v972
        %v1074 = vadd.f32 %v761, %v1021
        %v1075 = vadd.f32 %v762, %v877
        %v1076 = vadd.f32 %v763, %v926
        %v1077 = vadd.f32 %v764, %v975
        %v1078 = vadd.f32 %v765, %v1024
        %v1079 = vadd.f32 %v766, %v879
        %v1080 = vadd.f32 %v767, %v928
        %v1081 = vadd.f32 %v768, %v977
        %v1082 = vadd.f32 %v769, %v1026
        %v1083 = vadd.f32 %v770, %v882
        %v1084 = vadd.f32 %v771, %v931
        %v1085 = vadd.f32 %v772, %v980
        %v1086 = vadd.f32 %v773, %v1029
        %v1087 = vadd.f32 %v774, %v884
        %v1088 = vadd.f32 %v775, %v933
        %v1089 = vadd.f32 %v776, %v982
        %v1090 = vadd.f32 %v777, %v1031
        %v1091 = vadd.f32 %v778, %v887
        %v1092 = vadd.f32 %v779, %v936
        %v1093 = vadd.f32 %v780, %v985
        %v1094 = vadd.f32 %v781, %v1034
        %v1095 = vadd.f32 %v782, %v889
        %v1096 = vadd.f32 %v783, %v938
        %v1097 = vadd.f32 %v784, %v987
        %v1098 = vadd.f32 %v785, %v1036
        %v1099 = vadd.f32 %v786, %v892
        %v1100 = vadd.f32 %v787, %v941
        %v1101 = vadd.f32 %v788, %v990
        %v1102 = vadd.f32 %v789, %v1039
        %v1103 = vadd.f32 %v790, %v894
        %v1104 = vadd.f32 %v791, %v943
        %v1105 = vadd.f32 %v792, %v992
        %v1106 = vadd.f32 %v793, %v1041
        %1107 = vst [vmem:[%s451] sm:$0xff] %v1043
        %1108 = vst [vmem:[%s451 + $0x8] sm:$0xff] %v1044
        %1109 = vst [vmem:[%s451 + $0x10] sm:$0xff] %v1045
        %1110 = vst [vmem:[%s451 + $0x18] sm:$0xff] %v1046
        %1111 = vst [vmem:[%s451 + $0x20] sm:$0xff] %v1047
        %1112 = vst [vmem:[%s451 + $0x28] sm:$0xff] %v1048
        %1113 = vst [vmem:[%s451 + $0x30] sm:$0xff] %v1049
        %1114 = vst [vmem:[%s451 + $0x38] sm:$0xff] %v1050
        %1115 = vst [vmem:[%s451 + $0x40] sm:$0xff] %v1051
        %1116 = vst [vmem:[%s451 + $0x48] sm:$0xff] %v1052
        %1117 = vst [vmem:[%s451 + $0x50] sm:$0xff] %v1053
        %1118 = vst [vmem:[%s451 + $0x58] sm:$0xff] %v1054
        %1119 = vst [vmem:[%s451 + $0x60] sm:$0xff] %v1055
        %1120 = vst [vmem:[%s451 + $0x68] sm:$0xff] %v1056
        %1121 = vst [vmem:[%s451 + $0x70] sm:$0xff] %v1057
        %1122 = vst [vmem:[%s451 + $0x78] sm:$0xff] %v1058
        %1123 = vst [vmem:[%s451 + $0x80] sm:$0xff] %v1059
        %1124 = vst [vmem:[%s451 + $0x88] sm:$0xff] %v1060
        %1125 = vst [vmem:[%s451 + $0x90] sm:$0xff] %v1061
        %1126 = vst [vmem:[%s451 + $0x98] sm:$0xff] %v1062
        %1127 = vst [vmem:[%s451 + $0xa0] sm:$0xff] %v1063
        %1128 = vst [vmem:[%s451 + $0xa8] sm:$0xff] %v1064
        %1129 = vst [vmem:[%s451 + $0xb0] sm:$0xff] %v1065
        %1130 = vst [vmem:[%s451 + $0xb8] sm:$0xff] %v1066
        %1131 = vst [vmem:[%s451 + $0xc0] sm:$0xff] %v1067
        %1132 = vst [vmem:[%s451 + $0xc8] sm:$0xff] %v1068
        %1133 = vst [vmem:[%s451 + $0xd0] sm:$0xff] %v1069
        %1134 = vst [vmem:[%s451 + $0xd8] sm:$0xff] %v1070
        %1135 = vst [vmem:[%s451 + $0xe0] sm:$0xff] %v1071
        %1136 = vst [vmem:[%s451 + $0xe8] sm:$0xff] %v1072
        %1137 = vst [vmem:[%s451 + $0xf0] sm:$0xff] %v1073
        %1138 = vst [vmem:[%s451 + $0xf8] sm:$0xff] %v1074
        %1139 = vst [vmem:[%s451 + $0x100] sm:$0xff] %v1075
        %1140 = vst [vmem:[%s451 + $0x108] sm:$0xff] %v1076
        %1141 = vst [vmem:[%s451 + $0x110] sm:$0xff] %v1077
        %1142 = vst [vmem:[%s451 + $0x118] sm:$0xff] %v1078
        %1143 = vst [vmem:[%s451 + $0x120] sm:$0xff] %v1079
        %1144 = vst [vmem:[%s451 + $0x128] sm:$0xff] %v1080
        %1145 = vst [vmem:[%s451 + $0x130] sm:$0xff] %v1081
        %1146 = vst [vmem:[%s451 + $0x138] sm:$0xff] %v1082
        %1147 = vst [vmem:[%s451 + $0x140] sm:$0xff] %v1083
        %1148 = vst [vmem:[%s451 + $0x148] sm:$0xff] %v1084
        %1149 = vst [vmem:[%s451 + $0x150] sm:$0xff] %v1085
        %1150 = vst [vmem:[%s451 + $0x158] sm:$0xff] %v1086
        %1151 = vst [vmem:[%s451 + $0x160] sm:$0xff] %v1087
        %1152 = vst [vmem:[%s451 + $0x168] sm:$0xff] %v1088
        %1153 = vst [vmem:[%s451 + $0x170] sm:$0xff] %v1089
        %1154 = vst [vmem:[%s451 + $0x178] sm:$0xff] %v1090
        %1155 = vst [vmem:[%s451 + $0x180] sm:$0xff] %v1091
        %1156 = vst [vmem:[%s451 + $0x188] sm:$0xff] %v1092
        %1157 = vst [vmem:[%s451 + $0x190] sm:$0xff] %v1093
        %1158 = vst [vmem:[%s451 + $0x198] sm:$0xff] %v1094
        %1159 = vst [vmem:[%s451 + $0x1a0] sm:$0xff] %v1095
        %1160 = vst [vmem:[%s451 + $0x1a8] sm:$0xff] %v1096
        %1161 = vst [vmem:[%s451 + $0x1b0] sm:$0xff] %v1097
        %1162 = vst [vmem:[%s451 + $0x1b8] sm:$0xff] %v1098
        %1163 = vst [vmem:[%s451 + $0x1c0] sm:$0xff] %v1099
        %1164 = vst [vmem:[%s451 + $0x1c8] sm:$0xff] %v1100
        %1165 = vst [vmem:[%s451 + $0x1d0] sm:$0xff] %v1101
        %1166 = vst [vmem:[%s451 + $0x1d8] sm:$0xff] %v1102
        %1167 = vst [vmem:[%s451 + $0x1e0] sm:$0xff] %v1103
        %1168 = vst [vmem:[%s451 + $0x1e8] sm:$0xff] %v1104
        %1169 = vst [vmem:[%s451 + $0x1f0] sm:$0xff] %v1105
        %1170 = vst [vmem:[%s451 + $0x1f8] sm:$0xff] %v1106
        %v1171 = vld [vmem:[#allocation2] sm:$0xf]
        %v1172 = vunpack.c.l.bf16 %v690
        %v1173 = vunpack.c.l.bf16 %v702
        %v1174 = vunpack.c.l.bf16 %v714
        %v1175 = vunpack.c.l.bf16 %v726
        %v1176 = vunpack.c.h.bf16 %v690
        %v1177 = vunpack.c.h.bf16 %v702
        %v1178 = vunpack.c.h.bf16 %v714
        %v1179 = vunpack.c.h.bf16 %v726
        %v1180 = vunpack.c.l.bf16 %v691
        %v1181 = vunpack.c.l.bf16 %v703
        %v1182 = vunpack.c.l.bf16 %v715
        %v1183 = vunpack.c.l.bf16 %v727
        %v1184 = vunpack.c.h.bf16 %v691
        %v1185 = vunpack.c.h.bf16 %v703
        %v1186 = vunpack.c.h.bf16 %v715
        %v1187 = vunpack.c.h.bf16 %v727
        %v1188 = vadd.f32 %v1172, %v1176
        %v1189 = vadd.f32 %v1188, %v1180
        %v1190 = vadd.f32 %v1189, %v1184
        %v1191 = vrot.slane %v1190, 4
        %v1192 = vadd.f32 %v1190, %v1191
        %v1193 = vrot.slane %v1192, 2
        %v1194 = vadd.f32 %v1192, %v1193
        %v1195 = vrot.slane %v1194, 1
        %v1196 = vadd.f32 %v1194, %v1195
        %v1197 = vadd.f32 %v1173, %v1177
        %v1198 = vadd.f32 %v1197, %v1181
        %v1199 = vadd.f32 %v1198, %v1185
        %v1200 = vrot.slane %v1199, 4
        %v1201 = vadd.f32 %v1199, %v1200
        %v1202 = vrot.slane %v1201, 2
        %v1203 = vadd.f32 %v1201, %v1202
        %v1204 = vrot.slane %v1203, 1
        %v1205 = vadd.f32 %v1203, %v1204
        %v1206 = vadd.f32 %v1174, %v1178
        %v1207 = vadd.f32 %v1206, %v1182
        %v1208 = vadd.f32 %v1207, %v1186
        %v1209 = vrot.slane %v1208, 4
        %v1210 = vadd.f32 %v1208, %v1209
        %v1211 = vrot.slane %v1210, 2
        %v1212 = vadd.f32 %v1210, %v1211
        %v1213 = vrot.slane %v1212, 1
        %v1214 = vadd.f32 %v1212, %v1213
        %v1215 = vadd.f32 %v1175, %v1179
        %v1216 = vadd.f32 %v1215, %v1183
        %v1217 = vadd.f32 %v1216, %v1187
        %v1218 = vrot.slane %v1217, 4
        %v1219 = vadd.f32 %v1217, %v1218
        %v1220 = vrot.slane %v1219, 2
        %v1221 = vadd.f32 %v1219, %v1220
        %v1222 = vrot.slane %v1221, 1
        %v1223 = vadd.f32 %v1221, %v1222
        %v1228 = vrot.slane %v1205, 7
        %v1229 = vrot.slane %v1214, 6
        %v1230 = vrot.slane %v1223, 5
        %vm1231 = vcmask 1040384
        %v1232 = vsel %vm1231, %v1196, %v1228
        %vm1233 = vcmask 1042434
        %v1234 = vsel %vm1233, %v1229, %v1230
        %vm1235 = vcmask 1041408
        %v1236 = vsel %vm1235, %v1232, %v1234
        %v1238 = vadd.f32 %v1171, %v1236
        %v1239 = vlaneseq
        %vm1240 = vcmp.ge.s32.totalorder %v1239, 0
        %vm1241 = vcmp.lt.s32.totalorder %v1239, 512
        %vm1242 = vmand %vm1240, %vm1241
        %1243 = vst.msk [vmem:[#allocation2] sm:$0xf] %vm1242, %v1238
        %p1244 = scmp.eq.s32.totalorder %s20, 2
        // Predicated region
        $region89: #{centroid_estimator_forward.1} parent=79 // pred_check
          %p1245 = pneg %p1244
        $region90: #{centroid_estimator_forward.1} parent=79 // pred_check_branch
          %1247 = sbr.rel (%p1245) target = $region92
        $region91: #{centroid_estimator_forward.1} parent=79 // pred_region
          %v1248 = vld [vmem:[#allocation2] sm:$0xf]
          %v1249 = vadd.f32 %v1248, 0.001
          %v1250 = vrcp.pop %v1249
          %v1251 = vmul.f32 %v1249, %v1250
          %v1252 = vsub.f32 1.0, %v1251
          %v1253 = vmul.f32 %v1250, %v1252
          %v1254 = vadd.f32 %v1250, %v1253
          %vm1255 = vweird.f32 %v1249
          %vm1256 = vweird.f32 %v1250
          %vm1257 = vmor %vm1255, %vm1256
          %v1258 = vsel %vm1257, %v1250, %v1254
          %v1259 = vand.u32 2147483647, %v1249
          %vm1260 = vcmp.eq.f32.partialorder %v1259, 8.507059e+37
          %v1261 = vand.u32 %v1249, 2147483648
          %v1262 = vor.u32 1.1754944e-38, %v1261
          %v1263 = vsel %vm1260, %v1262, %v1258
          %v1264 = vmul.f32 1.0, %v1263
          %v1265 = vld [vmem:[%s451] sm:$0xff]
          %v1266 = vld [vmem:[%s451 + $0x8] sm:$0xff]
          %v1267 = vld [vmem:[%s451 + $0x10] sm:$0xff]
          %v1268 = vld [vmem:[%s451 + $0x18] sm:$0xff]
          %v1269 = vld [vmem:[%s451 + $0x20] sm:$0xff]
          %v1270 = vld [vmem:[%s451 + $0x28] sm:$0xff]
          %v1271 = vld [vmem:[%s451 + $0x30] sm:$0xff]
          %v1272 = vld [vmem:[%s451 + $0x38] sm:$0xff]
          %v1273 = vld [vmem:[%s451 + $0x40] sm:$0xff]
          %v1274 = vld [vmem:[%s451 + $0x48] sm:$0xff]
          %v1275 = vld [vmem:[%s451 + $0x50] sm:$0xff]
          %v1276 = vld [vmem:[%s451 + $0x58] sm:$0xff]
          %v1277 = vld [vmem:[%s451 + $0x60] sm:$0xff]
          %v1278 = vld [vmem:[%s451 + $0x68] sm:$0xff]
          %v1279 = vld [vmem:[%s451 + $0x70] sm:$0xff]
          %v1280 = vld [vmem:[%s451 + $0x78] sm:$0xff]
          %v1281 = vld [vmem:[%s451 + $0x80] sm:$0xff]
          %v1282 = vld [vmem:[%s451 + $0x88] sm:$0xff]
          %v1283 = vld [vmem:[%s451 + $0x90] sm:$0xff]
          %v1284 = vld [vmem:[%s451 + $0x98] sm:$0xff]
          %v1285 = vld [vmem:[%s451 + $0xa0] sm:$0xff]
          %v1286 = vld [vmem:[%s451 + $0xa8] sm:$0xff]
          %v1287 = vld [vmem:[%s451 + $0xb0] sm:$0xff]
          %v1288 = vld [vmem:[%s451 + $0xb8] sm:$0xff]
          %v1289 = vld [vmem:[%s451 + $0xc0] sm:$0xff]
          %v1290 = vld [vmem:[%s451 + $0xc8] sm:$0xff]
          %v1291 = vld [vmem:[%s451 + $0xd0] sm:$0xff]
          %v1292 = vld [vmem:[%s451 + $0xd8] sm:$0xff]
          %v1293 = vld [vmem:[%s451 + $0xe0] sm:$0xff]
          %v1294 = vld [vmem:[%s451 + $0xe8] sm:$0xff]
          %v1295 = vld [vmem:[%s451 + $0xf0] sm:$0xff]
          %v1296 = vld [vmem:[%s451 + $0xf8] sm:$0xff]
          %v1297 = vld [vmem:[%s451 + $0x100] sm:$0xff]
          %v1298 = vld [vmem:[%s451 + $0x108] sm:$0xff]
          %v1299 = vld [vmem:[%s451 + $0x110] sm:$0xff]
          %v1300 = vld [vmem:[%s451 + $0x118] sm:$0xff]
          %v1301 = vld [vmem:[%s451 + $0x120] sm:$0xff]
          %v1302 = vld [vmem:[%s451 + $0x128] sm:$0xff]
          %v1303 = vld [vmem:[%s451 + $0x130] sm:$0xff]
          %v1304 = vld [vmem:[%s451 + $0x138] sm:$0xff]
          %v1305 = vld [vmem:[%s451 + $0x140] sm:$0xff]
          %v1306 = vld [vmem:[%s451 + $0x148] sm:$0xff]
          %v1307 = vld [vmem:[%s451 + $0x150] sm:$0xff]
          %v1308 = vld [vmem:[%s451 + $0x158] sm:$0xff]
          %v1309 = vld [vmem:[%s451 + $0x160] sm:$0xff]
          %v1310 = vld [vmem:[%s451 + $0x168] sm:$0xff]
          %v1311 = vld [vmem:[%s451 + $0x170] sm:$0xff]
          %v1312 = vld [vmem:[%s451 + $0x178] sm:$0xff]
          %v1313 = vld [vmem:[%s451 + $0x180] sm:$0xff]
          %v1314 = vld [vmem:[%s451 + $0x188] sm:$0xff]
          %v1315 = vld [vmem:[%s451 + $0x190] sm:$0xff]
          %v1316 = vld [vmem:[%s451 + $0x198] sm:$0xff]
          %v1317 = vld [vmem:[%s451 + $0x1a0] sm:$0xff]
          %v1318 = vld [vmem:[%s451 + $0x1a8] sm:$0xff]
          %v1319 = vld [vmem:[%s451 + $0x1b0] sm:$0xff]
          %v1320 = vld [vmem:[%s451 + $0x1b8] sm:$0xff]
          %v1321 = vld [vmem:[%s451 + $0x1c0] sm:$0xff]
          %v1322 = vld [vmem:[%s451 + $0x1c8] sm:$0xff]
          %v1323 = vld [vmem:[%s451 + $0x1d0] sm:$0xff]
          %v1324 = vld [vmem:[%s451 + $0x1d8] sm:$0xff]
          %v1325 = vld [vmem:[%s451 + $0x1e0] sm:$0xff]
          %v1326 = vld [vmem:[%s451 + $0x1e8] sm:$0xff]
          %v1327 = vld [vmem:[%s451 + $0x1f0] sm:$0xff]
          %v1328 = vld [vmem:[%s451 + $0x1f8] sm:$0xff]
          %v1330 = vperm.slane %v1264, 0
          %v1331 = vperm.slane %v1264, 1
          %v1332 = vperm.slane %v1264, 2
          %v1333 = vperm.slane %v1264, 3
          %v1338 = vmul.f32 %v1265, %v1330
          %v1339 = vmul.f32 %v1266, %v1331
          %v1340 = vmul.f32 %v1267, %v1332
          %v1341 = vmul.f32 %v1268, %v1333
          %v1342 = vmul.f32 %v1269, %v1330
          %v1343 = vmul.f32 %v1270, %v1331
          %v1344 = vmul.f32 %v1271, %v1332
          %v1345 = vmul.f32 %v1272, %v1333
          %v1346 = vmul.f32 %v1273, %v1330
          %v1347 = vmul.f32 %v1274, %v1331
          %v1348 = vmul.f32 %v1275, %v1332
          %v1349 = vmul.f32 %v1276, %v1333
          %v1350 = vmul.f32 %v1277, %v1330
          %v1351 = vmul.f32 %v1278, %v1331
          %v1352 = vmul.f32 %v1279, %v1332
          %v1353 = vmul.f32 %v1280, %v1333
          %v1354 = vmul.f32 %v1281, %v1330
          %v1355 = vmul.f32 %v1282, %v1331
          %v1356 = vmul.f32 %v1283, %v1332
          %v1357 = vmul.f32 %v1284, %v1333
          %v1358 = vmul.f32 %v1285, %v1330
          %v1359 = vmul.f32 %v1286, %v1331
          %v1360 = vmul.f32 %v1287, %v1332
          %v1361 = vmul.f32 %v1288, %v1333
          %v1362 = vmul.f32 %v1289, %v1330
          %v1363 = vmul.f32 %v1290, %v1331
          %v1364 = vmul.f32 %v1291, %v1332
          %v1365 = vmul.f32 %v1292, %v1333
          %v1366 = vmul.f32 %v1293, %v1330
          %v1367 = vmul.f32 %v1294, %v1331
          %v1368 = vmul.f32 %v1295, %v1332
          %v1369 = vmul.f32 %v1296, %v1333
          %v1370 = vmul.f32 %v1297, %v1330
          %v1371 = vmul.f32 %v1298, %v1331
          %v1372 = vmul.f32 %v1299, %v1332
          %v1373 = vmul.f32 %v1300, %v1333
          %v1374 = vmul.f32 %v1301, %v1330
          %v1375 = vmul.f32 %v1302, %v1331
          %v1376 = vmul.f32 %v1303, %v1332
          %v1377 = vmul.f32 %v1304, %v1333
          %v1378 = vmul.f32 %v1305, %v1330
          %v1379 = vmul.f32 %v1306, %v1331
          %v1380 = vmul.f32 %v1307, %v1332
          %v1381 = vmul.f32 %v1308, %v1333
          %v1382 = vmul.f32 %v1309, %v1330
          %v1383 = vmul.f32 %v1310, %v1331
          %v1384 = vmul.f32 %v1311, %v1332
          %v1385 = vmul.f32 %v1312, %v1333
          %v1386 = vmul.f32 %v1313, %v1330
          %v1387 = vmul.f32 %v1314, %v1331
          %v1388 = vmul.f32 %v1315, %v1332
          %v1389 = vmul.f32 %v1316, %v1333
          %v1390 = vmul.f32 %v1317, %v1330
          %v1391 = vmul.f32 %v1318, %v1331
          %v1392 = vmul.f32 %v1319, %v1332
          %v1393 = vmul.f32 %v1320, %v1333
          %v1394 = vmul.f32 %v1321, %v1330
          %v1395 = vmul.f32 %v1322, %v1331
          %v1396 = vmul.f32 %v1323, %v1332
          %v1397 = vmul.f32 %v1324, %v1333
          %v1398 = vmul.f32 %v1325, %v1330
          %v1399 = vmul.f32 %v1326, %v1331
          %v1400 = vmul.f32 %v1327, %v1332
          %v1401 = vmul.f32 %v1328, %v1333
          %v1402 = vld [vmem:[%s444] sm:$0xff]
          %v1403 = vld [vmem:[%s444 + $0x8] sm:$0xff]
          %v1404 = vld [vmem:[%s444 + $0x10] sm:$0xff]
          %v1405 = vld [vmem:[%s444 + $0x18] sm:$0xff]
          %v1406 = vld [vmem:[%s444 + $0x20] sm:$0xff]
          %v1407 = vld [vmem:[%s444 + $0x28] sm:$0xff]
          %v1408 = vld [vmem:[%s444 + $0x30] sm:$0xff]
          %v1409 = vld [vmem:[%s444 + $0x38] sm:$0xff]
          %v1410 = vld [vmem:[%s444 + $0x40] sm:$0xff]
          %v1411 = vld [vmem:[%s444 + $0x48] sm:$0xff]
          %v1412 = vld [vmem:[%s444 + $0x50] sm:$0xff]
          %v1413 = vld [vmem:[%s444 + $0x58] sm:$0xff]
          %v1414 = vld [vmem:[%s444 + $0x60] sm:$0xff]
          %v1415 = vld [vmem:[%s444 + $0x68] sm:$0xff]
          %v1416 = vld [vmem:[%s444 + $0x70] sm:$0xff]
          %v1417 = vld [vmem:[%s444 + $0x78] sm:$0xff]
          %v1418 = vld [vmem:[%s444 + $0x80] sm:$0xff]
          %v1419 = vld [vmem:[%s444 + $0x88] sm:$0xff]
          %v1420 = vld [vmem:[%s444 + $0x90] sm:$0xff]
          %v1421 = vld [vmem:[%s444 + $0x98] sm:$0xff]
          %v1422 = vld [vmem:[%s444 + $0xa0] sm:$0xff]
          %v1423 = vld [vmem:[%s444 + $0xa8] sm:$0xff]
          %v1424 = vld [vmem:[%s444 + $0xb0] sm:$0xff]
          %v1425 = vld [vmem:[%s444 + $0xb8] sm:$0xff]
          %v1426 = vld [vmem:[%s444 + $0xc0] sm:$0xff]
          %v1427 = vld [vmem:[%s444 + $0xc8] sm:$0xff]
          %v1428 = vld [vmem:[%s444 + $0xd0] sm:$0xff]
          %v1429 = vld [vmem:[%s444 + $0xd8] sm:$0xff]
          %v1430 = vld [vmem:[%s444 + $0xe0] sm:$0xff]
          %v1431 = vld [vmem:[%s444 + $0xe8] sm:$0xff]
          %v1432 = vld [vmem:[%s444 + $0xf0] sm:$0xff]
          %v1433 = vld [vmem:[%s444 + $0xf8] sm:$0xff]
          %v1434 = vld [vmem:[%s444 + $0x100] sm:$0xff]
          %v1435 = vld [vmem:[%s444 + $0x108] sm:$0xff]
          %v1436 = vld [vmem:[%s444 + $0x110] sm:$0xff]
          %v1437 = vld [vmem:[%s444 + $0x118] sm:$0xff]
          %v1438 = vld [vmem:[%s444 + $0x120] sm:$0xff]
          %v1439 = vld [vmem:[%s444 + $0x128] sm:$0xff]
          %v1440 = vld [vmem:[%s444 + $0x130] sm:$0xff]
          %v1441 = vld [vmem:[%s444 + $0x138] sm:$0xff]
          %v1442 = vld [vmem:[%s444 + $0x140] sm:$0xff]
          %v1443 = vld [vmem:[%s444 + $0x148] sm:$0xff]
          %v1444 = vld [vmem:[%s444 + $0x150] sm:$0xff]
          %v1445 = vld [vmem:[%s444 + $0x158] sm:$0xff]
          %v1446 = vld [vmem:[%s444 + $0x160] sm:$0xff]
          %v1447 = vld [vmem:[%s444 + $0x168] sm:$0xff]
          %v1448 = vld [vmem:[%s444 + $0x170] sm:$0xff]
          %v1449 = vld [vmem:[%s444 + $0x178] sm:$0xff]
          %v1450 = vld [vmem:[%s444 + $0x180] sm:$0xff]
          %v1451 = vld [vmem:[%s444 + $0x188] sm:$0xff]
          %v1452 = vld [vmem:[%s444 + $0x190] sm:$0xff]
          %v1453 = vld [vmem:[%s444 + $0x198] sm:$0xff]
          %v1454 = vld [vmem:[%s444 + $0x1a0] sm:$0xff]
          %v1455 = vld [vmem:[%s444 + $0x1a8] sm:$0xff]
          %v1456 = vld [vmem:[%s444 + $0x1b0] sm:$0xff]
          %v1457 = vld [vmem:[%s444 + $0x1b8] sm:$0xff]
          %v1458 = vld [vmem:[%s444 + $0x1c0] sm:$0xff]
          %v1459 = vld [vmem:[%s444 + $0x1c8] sm:$0xff]
          %v1460 = vld [vmem:[%s444 + $0x1d0] sm:$0xff]
          %v1461 = vld [vmem:[%s444 + $0x1d8] sm:$0xff]
          %v1462 = vld [vmem:[%s444 + $0x1e0] sm:$0xff]
          %v1463 = vld [vmem:[%s444 + $0x1e8] sm:$0xff]
          %v1464 = vld [vmem:[%s444 + $0x1f0] sm:$0xff]
          %v1465 = vld [vmem:[%s444 + $0x1f8] sm:$0xff]
          %v1466 = vmul.f32 %v1402, 0.9
          %v1467 = vmul.f32 %v1403, 0.9
          %v1468 = vmul.f32 %v1404, 0.9
          %v1469 = vmul.f32 %v1405, 0.9
          %v1470 = vmul.f32 %v1406, 0.9
          %v1471 = vmul.f32 %v1407, 0.9
          %v1472 = vmul.f32 %v1408, 0.9
          %v1473 = vmul.f32 %v1409, 0.9
          %v1474 = vmul.f32 %v1410, 0.9
          %v1475 = vmul.f32 %v1411, 0.9
          %v1476 = vmul.f32 %v1412, 0.9
          %v1477 = vmul.f32 %v1413, 0.9
          %v1478 = vmul.f32 %v1414, 0.9
          %v1479 = vmul.f32 %v1415, 0.9
          %v1480 = vmul.f32 %v1416, 0.9
          %v1481 = vmul.f32 %v1417, 0.9
          %v1482 = vmul.f32 %v1418, 0.9
          %v1483 = vmul.f32 %v1419, 0.9
          %v1484 = vmul.f32 %v1420, 0.9
          %v1485 = vmul.f32 %v1421, 0.9
          %v1486 = vmul.f32 %v1422, 0.9
          %v1487 = vmul.f32 %v1423, 0.9
          %v1488 = vmul.f32 %v1424, 0.9
          %v1489 = vmul.f32 %v1425, 0.9
          %v1490 = vmul.f32 %v1426, 0.9
          %v1491 = vmul.f32 %v1427, 0.9
          %v1492 = vmul.f32 %v1428, 0.9
          %v1493 = vmul.f32 %v1429, 0.9
          %v1494 = vmul.f32 %v1430, 0.9
          %v1495 = vmul.f32 %v1431, 0.9
          %v1496 = vmul.f32 %v1432, 0.9
          %v1497 = vmul.f32 %v1433, 0.9
          %v1498 = vmul.f32 %v1434, 0.9
          %v1499 = vmul.f32 %v1435, 0.9
          %v1500 = vmul.f32 %v1436, 0.9
          %v1501 = vmul.f32 %v1437, 0.9
          %v1502 = vmul.f32 %v1438, 0.9
          %v1503 = vmul.f32 %v1439, 0.9
          %v1504 = vmul.f32 %v1440, 0.9
          %v1505 = vmul.f32 %v1441, 0.9
          %v1506 = vmul.f32 %v1442, 0.9
          %v1507 = vmul.f32 %v1443, 0.9
          %v1508 = vmul.f32 %v1444, 0.9
          %v1509 = vmul.f32 %v1445, 0.9
          %v1510 = vmul.f32 %v1446, 0.9
          %v1511 = vmul.f32 %v1447, 0.9
          %v1512 = vmul.f32 %v1448, 0.9
          %v1513 = vmul.f32 %v1449, 0.9
          %v1514 = vmul.f32 %v1450, 0.9
          %v1515 = vmul.f32 %v1451, 0.9
          %v1516 = vmul.f32 %v1452, 0.9
          %v1517 = vmul.f32 %v1453, 0.9
          %v1518 = vmul.f32 %v1454, 0.9
          %v1519 = vmul.f32 %v1455, 0.9
          %v1520 = vmul.f32 %v1456, 0.9
          %v1521 = vmul.f32 %v1457, 0.9
          %v1522 = vmul.f32 %v1458, 0.9
          %v1523 = vmul.f32 %v1459, 0.9
          %v1524 = vmul.f32 %v1460, 0.9
          %v1525 = vmul.f32 %v1461, 0.9
          %v1526 = vmul.f32 %v1462, 0.9
          %v1527 = vmul.f32 %v1463, 0.9
          %v1528 = vmul.f32 %v1464, 0.9
          %v1529 = vmul.f32 %v1465, 0.9
          %v1530 = vmul.f32 %v1338, 0.1
          %v1531 = vmul.f32 %v1339, 0.1
          %v1532 = vmul.f32 %v1340, 0.1
          %v1533 = vmul.f32 %v1341, 0.1
          %v1534 = vmul.f32 %v1342, 0.1
          %v1535 = vmul.f32 %v1343, 0.1
          %v1536 = vmul.f32 %v1344, 0.1
          %v1537 = vmul.f32 %v1345, 0.1
          %v1538 = vmul.f32 %v1346, 0.1
          %v1539 = vmul.f32 %v1347, 0.1
          %v1540 = vmul.f32 %v1348, 0.1
          %v1541 = vmul.f32 %v1349, 0.1
          %v1542 = vmul.f32 %v1350, 0.1
          %v1543 = vmul.f32 %v1351, 0.1
          %v1544 = vmul.f32 %v1352, 0.1
          %v1545 = vmul.f32 %v1353, 0.1
          %v1546 = vmul.f32 %v1354, 0.1
          %v1547 = vmul.f32 %v1355, 0.1
          %v1548 = vmul.f32 %v1356, 0.1
          %v1549 = vmul.f32 %v1357, 0.1
          %v1550 = vmul.f32 %v1358, 0.1
          %v1551 = vmul.f32 %v1359, 0.1
          %v1552 = vmul.f32 %v1360, 0.1
          %v1553 = vmul.f32 %v1361, 0.1
          %v1554 = vmul.f32 %v1362, 0.1
          %v1555 = vmul.f32 %v1363, 0.1
          %v1556 = vmul.f32 %v1364, 0.1
          %v1557 = vmul.f32 %v1365, 0.1
          %v1558 = vmul.f32 %v1366, 0.1
          %v1559 = vmul.f32 %v1367, 0.1
          %v1560 = vmul.f32 %v1368, 0.1
          %v1561 = vmul.f32 %v1369, 0.1
          %v1562 = vmul.f32 %v1370, 0.1
          %v1563 = vmul.f32 %v1371, 0.1
          %v1564 = vmul.f32 %v1372, 0.1
          %v1565 = vmul.f32 %v1373, 0.1
          %v1566 = vmul.f32 %v1374, 0.1
          %v1567 = vmul.f32 %v1375, 0.1
          %v1568 = vmul.f32 %v1376, 0.1
          %v1569 = vmul.f32 %v1377, 0.1
          %v1570 = vmul.f32 %v1378, 0.1
          %v1571 = vmul.f32 %v1379, 0.1
          %v1572 = vmul.f32 %v1380, 0.1
          %v1573 = vmul.f32 %v1381, 0.1
          %v1574 = vmul.f32 %v1382, 0.1
          %v1575 = vmul.f32 %v1383, 0.1
          %v1576 = vmul.f32 %v1384, 0.1
          %v1577 = vmul.f32 %v1385, 0.1
          %v1578 = vmul.f32 %v1386, 0.1
          %v1579 = vmul.f32 %v1387, 0.1
          %v1580 = vmul.f32 %v1388, 0.1
          %v1581 = vmul.f32 %v1389, 0.1
          %v1582 = vmul.f32 %v1390, 0.1
          %v1583 = vmul.f32 %v1391, 0.1
          %v1584 = vmul.f32 %v1392, 0.1
          %v1585 = vmul.f32 %v1393, 0.1
          %v1586 = vmul.f32 %v1394, 0.1
          %v1587 = vmul.f32 %v1395, 0.1
          %v1588 = vmul.f32 %v1396, 0.1
          %v1589 = vmul.f32 %v1397, 0.1
          %v1590 = vmul.f32 %v1398, 0.1
          %v1591 = vmul.f32 %v1399, 0.1
          %v1592 = vmul.f32 %v1400, 0.1
          %v1593 = vmul.f32 %v1401, 0.1
          %v1594 = vadd.f32 %v1466, %v1530
          %v1595 = vadd.f32 %v1467, %v1531
          %v1596 = vadd.f32 %v1468, %v1532
          %v1597 = vadd.f32 %v1469, %v1533
          %v1598 = vadd.f32 %v1470, %v1534
          %v1599 = vadd.f32 %v1471, %v1535
          %v1600 = vadd.f32 %v1472, %v1536
          %v1601 = vadd.f32 %v1473, %v1537
          %v1602 = vadd.f32 %v1474, %v1538
          %v1603 = vadd.f32 %v1475, %v1539
          %v1604 = vadd.f32 %v1476, %v1540
          %v1605 = vadd.f32 %v1477, %v1541
          %v1606 = vadd.f32 %v1478, %v1542
          %v1607 = vadd.f32 %v1479, %v1543
          %v1608 = vadd.f32 %v1480, %v1544
          %v1609 = vadd.f32 %v1481, %v1545
          %v1610 = vadd.f32 %v1482, %v1546
          %v1611 = vadd.f32 %v1483, %v1547
          %v1612 = vadd.f32 %v1484, %v1548
          %v1613 = vadd.f32 %v1485, %v1549
          %v1614 = vadd.f32 %v1486, %v1550
          %v1615 = vadd.f32 %v1487, %v1551
          %v1616 = vadd.f32 %v1488, %v1552
          %v1617 = vadd.f32 %v1489, %v1553
          %v1618 = vadd.f32 %v1490, %v1554
          %v1619 = vadd.f32 %v1491, %v1555
          %v1620 = vadd.f32 %v1492, %v1556
          %v1621 = vadd.f32 %v1493, %v1557
          %v1622 = vadd.f32 %v1494, %v1558
          %v1623 = vadd.f32 %v1495, %v1559
          %v1624 = vadd.f32 %v1496, %v1560
          %v1625 = vadd.f32 %v1497, %v1561
          %v1626 = vadd.f32 %v1498, %v1562
          %v1627 = vadd.f32 %v1499, %v1563
          %v1628 = vadd.f32 %v1500, %v1564
          %v1629 = vadd.f32 %v1501, %v1565
          %v1630 = vadd.f32 %v1502, %v1566
          %v1631 = vadd.f32 %v1503, %v1567
          %v1632 = vadd.f32 %v1504, %v1568
          %v1633 = vadd.f32 %v1505, %v1569
          %v1634 = vadd.f32 %v1506, %v1570
          %v1635 = vadd.f32 %v1507, %v1571
          %v1636 = vadd.f32 %v1508, %v1572
          %v1637 = vadd.f32 %v1509, %v1573
          %v1638 = vadd.f32 %v1510, %v1574
          %v1639 = vadd.f32 %v1511, %v1575
          %v1640 = vadd.f32 %v1512, %v1576
          %v1641 = vadd.f32 %v1513, %v1577
          %v1642 = vadd.f32 %v1514, %v1578
          %v1643 = vadd.f32 %v1515, %v1579
          %v1644 = vadd.f32 %v1516, %v1580
          %v1645 = vadd.f32 %v1517, %v1581
          %v1646 = vadd.f32 %v1518, %v1582
          %v1647 = vadd.f32 %v1519, %v1583
          %v1648 = vadd.f32 %v1520, %v1584
          %v1649 = vadd.f32 %v1521, %v1585
          %v1650 = vadd.f32 %v1522, %v1586
          %v1651 = vadd.f32 %v1523, %v1587
          %v1652 = vadd.f32 %v1524, %v1588
          %v1653 = vadd.f32 %v1525, %v1589
          %v1654 = vadd.f32 %v1526, %v1590
          %v1655 = vadd.f32 %v1527, %v1591
          %v1656 = vadd.f32 %v1528, %v1592
          %v1657 = vadd.f32 %v1529, %v1593
          %1658 = vst [vmem:[%s451] sm:$0xff] %v1594
          %1659 = vst [vmem:[%s451 + $0x8] sm:$0xff] %v1595
          %1660 = vst [vmem:[%s451 + $0x10] sm:$0xff] %v1596
          %1661 = vst [vmem:[%s451 + $0x18] sm:$0xff] %v1597
          %1662 = vst [vmem:[%s451 + $0x20] sm:$0xff] %v1598
          %1663 = vst [vmem:[%s451 + $0x28] sm:$0xff] %v1599
          %1664 = vst [vmem:[%s451 + $0x30] sm:$0xff] %v1600
          %1665 = vst [vmem:[%s451 + $0x38] sm:$0xff] %v1601
          %1666 = vst [vmem:[%s451 + $0x40] sm:$0xff] %v1602
          %1667 = vst [vmem:[%s451 + $0x48] sm:$0xff] %v1603
          %1668 = vst [vmem:[%s451 + $0x50] sm:$0xff] %v1604
          %1669 = vst [vmem:[%s451 + $0x58] sm:$0xff] %v1605
          %1670 = vst [vmem:[%s451 + $0x60] sm:$0xff] %v1606
          %1671 = vst [vmem:[%s451 + $0x68] sm:$0xff] %v1607
          %1672 = vst [vmem:[%s451 + $0x70] sm:$0xff] %v1608
          %1673 = vst [vmem:[%s451 + $0x78] sm:$0xff] %v1609
          %1674 = vst [vmem:[%s451 + $0x80] sm:$0xff] %v1610
          %1675 = vst [vmem:[%s451 + $0x88] sm:$0xff] %v1611
          %1676 = vst [vmem:[%s451 + $0x90] sm:$0xff] %v1612
          %1677 = vst [vmem:[%s451 + $0x98] sm:$0xff] %v1613
          %1678 = vst [vmem:[%s451 + $0xa0] sm:$0xff] %v1614
          %1679 = vst [vmem:[%s451 + $0xa8] sm:$0xff] %v1615
          %1680 = vst [vmem:[%s451 + $0xb0] sm:$0xff] %v1616
          %1681 = vst [vmem:[%s451 + $0xb8] sm:$0xff] %v1617
          %1682 = vst [vmem:[%s451 + $0xc0] sm:$0xff] %v1618
          %1683 = vst [vmem:[%s451 + $0xc8] sm:$0xff] %v1619
          %1684 = vst [vmem:[%s451 + $0xd0] sm:$0xff] %v1620
          %1685 = vst [vmem:[%s451 + $0xd8] sm:$0xff] %v1621
          %1686 = vst [vmem:[%s451 + $0xe0] sm:$0xff] %v1622
          %1687 = vst [vmem:[%s451 + $0xe8] sm:$0xff] %v1623
          %1688 = vst [vmem:[%s451 + $0xf0] sm:$0xff] %v1624
          %1689 = vst [vmem:[%s451 + $0xf8] sm:$0xff] %v1625
          %1690 = vst [vmem:[%s451 + $0x100] sm:$0xff] %v1626
          %1691 = vst [vmem:[%s451 + $0x108] sm:$0xff] %v1627
          %1692 = vst [vmem:[%s451 + $0x110] sm:$0xff] %v1628
          %1693 = vst [vmem:[%s451 + $0x118] sm:$0xff] %v1629
          %1694 = vst [vmem:[%s451 + $0x120] sm:$0xff] %v1630
          %1695 = vst [vmem:[%s451 + $0x128] sm:$0xff] %v1631
          %1696 = vst [vmem:[%s451 + $0x130] sm:$0xff] %v1632
          %1697 = vst [vmem:[%s451 + $0x138] sm:$0xff] %v1633
          %1698 = vst [vmem:[%s451 + $0x140] sm:$0xff] %v1634
          %1699 = vst [vmem:[%s451 + $0x148] sm:$0xff] %v1635
          %1700 = vst [vmem:[%s451 + $0x150] sm:$0xff] %v1636
          %1701 = vst [vmem:[%s451 + $0x158] sm:$0xff] %v1637
          %1702 = vst [vmem:[%s451 + $0x160] sm:$0xff] %v1638
          %1703 = vst [vmem:[%s451 + $0x168] sm:$0xff] %v1639
          %1704 = vst [vmem:[%s451 + $0x170] sm:$0xff] %v1640
          %1705 = vst [vmem:[%s451 + $0x178] sm:$0xff] %v1641
          %1706 = vst [vmem:[%s451 + $0x180] sm:$0xff] %v1642
          %1707 = vst [vmem:[%s451 + $0x188] sm:$0xff] %v1643
          %1708 = vst [vmem:[%s451 + $0x190] sm:$0xff] %v1644
          %1709 = vst [vmem:[%s451 + $0x198] sm:$0xff] %v1645
          %1710 = vst [vmem:[%s451 + $0x1a0] sm:$0xff] %v1646
          %1711 = vst [vmem:[%s451 + $0x1a8] sm:$0xff] %v1647
          %1712 = vst [vmem:[%s451 + $0x1b0] sm:$0xff] %v1648
          %1713 = vst [vmem:[%s451 + $0x1b8] sm:$0xff] %v1649
          %1714 = vst [vmem:[%s451 + $0x1c0] sm:$0xff] %v1650
          %1715 = vst [vmem:[%s451 + $0x1c8] sm:$0xff] %v1651
          %1716 = vst [vmem:[%s451 + $0x1d0] sm:$0xff] %v1652
          %1717 = vst [vmem:[%s451 + $0x1d8] sm:$0xff] %v1653
          %1718 = vst [vmem:[%s451 + $0x1e0] sm:$0xff] %v1654
          %1719 = vst [vmem:[%s451 + $0x1e8] sm:$0xff] %v1655
          %1720 = vst [vmem:[%s451 + $0x1f0] sm:$0xff] %v1656
          %1721 = vst [vmem:[%s451 + $0x1f8] sm:$0xff] %v1657
        $region92: #{centroid_estimator_forward.1} parent=79 // pred_fallthru
          _
        %s1722 = smul.u32 16, %s19
        %p1723 = scmp.lt.s32.totalorder %s1722, 31
        %s1724 = scalar_select %p1723, %s1722, 31
        %s1725 = smul.addr %s1724, 4
        %s1726 = smul.addr %s1725, 8
        %s1727 = scalar_lea.vmem %s4, %s1726
        // Predicated region
        $region93: #{centroid_estimator_forward.1} parent=79 // pred_check
          %p1728 = pneg %p151
        $region94: #{centroid_estimator_forward.1} parent=79 // pred_check_branch
          %1730 = sbr.rel (%p1728) target = $region96
        $region95: #{centroid_estimator_forward.1} parent=79 // pred_region
          %s1731 = smul.u32 16, %s19
        $region96: #{centroid_estimator_forward.1} parent=79 // pred_fallthru
          _
      $region80: #{centroid_estimator_forward.1} parent=5 // pred_fallthru
        _
      %p1732 = scmp.le.s32.totalorder 2, %s10
      // Predicated region
      $region97: #{centroid_estimator_forward.1} parent=5 // pred_check
        %p1733 = pneg %p1732
      $region98: #{centroid_estimator_forward.1} parent=5 // pred_check_branch
        %1735 = sbr.rel (%p1733) target = $region100
      $region99: #{centroid_estimator_forward.1} parent=5 // pred_region
        %s1736 = ssub.s32 %s10, 2
        // Predicated region
        $region101: #{centroid_estimator_forward.1} parent=99 // pred_check
          %p1737 = pneg %p157
        $region102: #{centroid_estimator_forward.1} parent=99 // pred_check_branch
          %1739 = sbr.rel (%p1737) target = $region104
        $region103: #{centroid_estimator_forward.1} parent=99 // pred_region
          %s1740 = smul.u32 16, %s21
          %p1741 = scmp.lt.s32.totalorder %s1740, 31
          %s1742 = scalar_select %p1741, %s1740, 31
          %s1743 = smul.addr %s1742, 4
          %s1744 = smul.addr %s1743, 8
          %s1745 = scalar_lea.vmem %s4, %s1744
        $region104: #{centroid_estimator_forward.1} parent=99 // pred_fallthru
          _
      $region100: #{centroid_estimator_forward.1} parent=5 // pred_fallthru
        _
    $region6: #{centroid_estimator_forward.1} parent=1 // loop_footer
      %s14 = sadd.s32 1, %s10
    $region7: #{centroid_estimator_forward.1} parent=1 // loop_footer_branch
      %9 = sbr.rel target = $region3
    $region8: #{centroid_estimator_forward.1} parent=1 // loop_exit
      _

</llo_original>
